<compile_context>
chip_gen: v7x
topology: tpu7x:2x2x1
jax: 0.10.0
libtpu: 0.0.40
codegen_flags: <defaults>
</compile_context>

<pallas_src>
import jax
import jax.numpy as jnp
from jax.experimental import pallas as pl
from jax.experimental.pallas import tpu as pltpu


def _round_up(v, m):
    return -(-v // m) * m


def _make_dualconv_kernel(bt, k, ho, wo_k, stride):
    h_hi = (ho - 1) * stride + 1

    def kernel(x_ref, w_ref, o_ref):
        # x_ref : (bt, Hp, Wpad, C)   zero-padded channels-last input block
        # w_ref : (K*K*C, Co)         fused depthwise*pointwise weights
        # o_ref : (bt, ho, wo_k, Co)  output block (columns >= wo are junk)
        x = x_ref[...]                                   # load the block once
        c = x.shape[-1]
        taps = [None] * (k * k)
        for j in range(k):
            # One W-window per j (offset-j slice of the loaded value; the
            # padded width guarantees j + wo_k <= Wpad, so always in bounds).
            xj = x[:, :, j:j + wo_k, :]                  # (bt, Hp, wo_k, C)
            for i in range(k):
                if stride == 1:
                    win = xj[:, i:i + ho]                # free leading-dim slice
                else:
                    win = xj[:, i:i + h_hi:stride]       # stride applied here
                taps[i * k + j] = win                    # (bt, ho, wo_k, C)
        # im2col slab: lane index (i*k + j)*C + c matches the rows of w_ref.
        slab = jnp.concatenate(taps, axis=-1)            # (bt, ho, wo_k, K*K*C)
        slab2 = slab.reshape(bt * ho * wo_k, k * k * c)  # wo_k % 8 == 0 -> cheap
        # Single fused depthwise+pointwise contraction on the MXU, f32 accum.
        y = jnp.dot(slab2, w_ref[...], preferred_element_type=jnp.float32)
        o_ref[...] = y.reshape(bt, ho, wo_k, -1).astype(o_ref.dtype)

    return kernel


def dualconv_g_forward(x, dw_w, pw_w, *, stride=1, padding=1):
    """DualConv_G forward.

    x    : (B, C, H, W)
    dw_w : (C, 1, K, K)   depthwise Conv2d weight (groups=C, stride=(s,1), bias=False)
    pw_w : (Co, C, 1, 1)  pointwise Conv2d weight (bias=False)
    """
    # TODO(synk): bias=True variant not implemented (module default is bias=False).
    B, C, H, W = x.shape
    dw_w = jnp.asarray(dw_w)
    pw_w = jnp.asarray(pw_w)
    k = dw_w.shape[-1]
    kk = k * k
    co = pw_w.shape[0]

    p, s = padding, stride
    hp = H + 2 * p                            # padded height
    wp_true = W + 2 * p                       # conv-padded width
    wo = wp_true - k + 1                      # true output width (W-stride is 1)
    ho = (H + 2 * p - k) // s + 1             # output height
    wo_k = _round_up(wo, 8)                   # in-kernel (aligned) output width
    wpad = _round_up(wo_k + k - 1, 8)         # aligned input width (>= wp_true)

    # ---- wrapper-side layout plumbing --------------------------------------
    # Channels-last + zero padding (conv padding + alignment padding on W).
    x_pad = jnp.pad(jnp.transpose(x, (0, 2, 3, 1)),
                    ((0, 0), (p, p), (p, wpad - W - p), (0, 0)))
    # Fused weight: W_eff[(i*k + j)*C + c, o] = dw[c, i, j] * pw[o, c]
    dw_t = jnp.transpose(dw_w.reshape(C, kk))                  # (K*K, C), t = i*k+j
    pw_t = jnp.transpose(pw_w.reshape(co, C))                  # (C, Co)
    w_eff = (dw_t[:, :, None] * pw_t[None, :, :]).reshape(kk * C, co)
    w_eff = w_eff.astype(x.dtype)

    # ---- batch blocking (no forced multi-step split; ~4 MiB working sets) ---
    isz = jnp.dtype(x.dtype).itemsize
    per_b = ((hp * wpad * C + ho * wo_k * co) * isz
             + ho * wo_k * (kk * C + co) * 4)            # f32 im2col + result
    bt = max(1, min(B, (4 << 20) // max(per_b, 1)))
    while B % bt:
        bt -= 1
    grid = (B // bt,)

    # VMEM: double-buffered in/out blocks + f32 temporaries + weights + slack,
    # capped below physical capacity (v7x only has 64 MiB per TensorCore).
    est = (2 * bt * (hp * wpad * C + ho * wo_k * co) * isz
           + bt * ho * wo_k * (kk * C + co) * 4 + kk * C * co * isz + (4 << 20))
    try:
        cap = int(pltpu.get_tpu_info().vmem_capacity_bytes)
    except Exception:
        cap = 64 << 20
    vmem_limit = int(min(max(est, 32 << 20), int(cap * 0.85)))
    # TODO(synk): for very large H*W*C per batch element, add an H-tile grid
    # axis with a (k-1)-row halo instead of whole-image blocks (v7x headroom).

    cost = pl.CostEstimate(
        flops=2 * B * ho * wo * kk * C * co,
        transcendentals=0,
        bytes_accessed=int(x_pad.size * isz + B * ho * wo_k * co * isz
                           + kk * C * co * isz),
    )

    kernel = _make_dualconv_kernel(bt, k, ho, wo_k, s)

    out4 = pl.pallas_call(
        kernel,
        out_shape=jax.ShapeDtypeStruct((B, ho, wo_k, co), x.dtype),
        grid_spec=pltpu.PrefetchScalarGridSpec(
            num_scalar_prefetch=0,
            grid=grid,
            in_specs=[
                pl.BlockSpec((bt, hp, wpad, C), lambda g: (g, 0, 0, 0)),
                pl.BlockSpec((kk * C, co), lambda g: (0, 0)),
            ],
            out_specs=pl.BlockSpec((bt, ho, wo_k, co), lambda g: (g, 0, 0, 0)),
        ),
        compiler_params=pltpu.CompilerParams(
            dimension_semantics=("parallel",),
            vmem_limit_bytes=vmem_limit,
        ),
        cost_estimate=cost,
    )(x_pad, w_eff)

    # Drop the alignment-padding columns and go back to NCHW.
    return jnp.transpose(out4[:, :, :wo, :], (0, 3, 1, 2))


def dualconv_g_reference(x, dw_w, pw_w, *, stride=1, padding=1):
    """Pure-JAX reference matching the PyTorch module (f32 everywhere)."""
    B, C, H, W = x.shape
    co = pw_w.shape[0]
    k = dw_w.shape[-1]
    dw = dw_w.reshape(C, k, k).astype(jnp.float32)
    xp = jnp.pad(x.astype(jnp.float32),
                 ((0, 0), (0, 0), (padding, padding), (padding, padding)))
    hs = H + 2 * padding - k + 1
    wo = W + 2 * padding - k + 1
    acc = jnp.zeros((B, C, hs, wo), jnp.float32)
    for i in range(k):
        for j in range(k):
            acc = acc + xp[:, :, i:i + hs, j:j + wo] * dw[:, i, j][None, :, None, None]
    acc = acc[:, :, ::stride, :]
    out = jnp.einsum('oc,bchw->bohw',
                     pw_w.reshape(co, C).astype(jnp.float32), acc,
                     precision=jax.lax.Precision.HIGHEST)
    return out.astype(x.dtype)


if __name__ == "__main__":
    B, Cin, Cout, H, W = 2, 4, 8, 16, 16

    key = jax.random.PRNGKey(0)
    kx, kd, kp = jax.random.split(key, 3)
    x = jax.random.normal(kx, (B, Cin, H, W), dtype=jnp.float32)
    dw_w = jax.random.normal(kd, (Cin, 1, 3, 3), dtype=jnp.float32) / 3.0
    pw_w = jax.random.normal(kp, (Cout, Cin, 1, 1), dtype=jnp.float32) / jnp.sqrt(Cin)

    out = dualconv_g_forward(x, dw_w, pw_w, stride=1, padding=1)
    out = jax.block_until_ready(out)

    ref = dualconv_g_reference(x, dw_w, pw_w, stride=1, padding=1)
    assert out.shape == (B, Cout, H, W), out.shape
    # f32 accumulation in-kernel; tolerance leaves margin for the MXU's
    # multi-pass f32 matmul path on the fused (depth = K^2*C) contraction.
    max_err = float(jnp.max(jnp.abs(out - ref)))
    assert jnp.allclose(out, ref, atol=2e-3, rtol=2e-3), max_err
    print("KERNEL_OK")
</pallas_src>

<mosaic_0001>
module attributes {stable_mosaic.version = 11 : i64} {
  func.func @kernel(%arg0: i32, %arg1: memref<2x18x24x4xf32, #tpu.memory_space<vmem>>, %arg2: memref<36x8xf32, #tpu.memory_space<vmem>>, %arg3: memref<2x16x16x8xf32, #tpu.memory_space<vmem>>) attributes {dimension_semantics = [#tpu.dimension_semantics<parallel>], iteration_bounds = array<i64: 1>, scalar_prefetch = 0 : i64, scratch_operands = 0 : i64, tpu.core_type = #tpu.core_type<tc>, window_params = [{transform_indices = @transform_0, window_bounds = array<i64: 2, 18, 24, 4>}, {pipeline_mode = #tpu.pipeline_mode<synchronous>, transform_indices = @transform_1, window_bounds = array<i64: 36, 8>}, {transform_indices = @transform_2, window_bounds = array<i64: 2, 16, 16, 8>}]} {
    %c0 = arith.constant 0 : index
    %c0_0 = arith.constant 0 : index
    %c0_1 = arith.constant 0 : index
    %c0_2 = arith.constant 0 : index
    %0 = vector.load %arg1[%c0, %c0_0, %c0_1, %c0_2] : memref<2x18x24x4xf32, #tpu.memory_space<vmem>>, vector<2x18x24x4xf32>
    %1 = vector.extract_strided_slice %0 {offsets = [0, 0, 0, 0], sizes = [2, 18, 16, 4], strides = [1, 1, 1, 1]} : vector<2x18x24x4xf32> to vector<2x18x16x4xf32>
    %2 = vector.extract_strided_slice %1 {offsets = [0, 0, 0, 0], sizes = [2, 16, 16, 4], strides = [1, 1, 1, 1]} : vector<2x18x16x4xf32> to vector<2x16x16x4xf32>
    %3 = vector.extract_strided_slice %1 {offsets = [0, 1, 0, 0], sizes = [2, 16, 16, 4], strides = [1, 1, 1, 1]} : vector<2x18x16x4xf32> to vector<2x16x16x4xf32>
    %4 = vector.extract_strided_slice %1 {offsets = [0, 2, 0, 0], sizes = [2, 16, 16, 4], strides = [1, 1, 1, 1]} : vector<2x18x16x4xf32> to vector<2x16x16x4xf32>
    %5 = vector.extract_strided_slice %0 {offsets = [0, 0, 1, 0], sizes = [2, 18, 16, 4], strides = [1, 1, 1, 1]} : vector<2x18x24x4xf32> to vector<2x18x16x4xf32>
    %6 = vector.extract_strided_slice %5 {offsets = [0, 0, 0, 0], sizes = [2, 16, 16, 4], strides = [1, 1, 1, 1]} : vector<2x18x16x4xf32> to vector<2x16x16x4xf32>
    %7 = vector.extract_strided_slice %5 {offsets = [0, 1, 0, 0], sizes = [2, 16, 16, 4], strides = [1, 1, 1, 1]} : vector<2x18x16x4xf32> to vector<2x16x16x4xf32>
    %8 = vector.extract_strided_slice %5 {offsets = [0, 2, 0, 0], sizes = [2, 16, 16, 4], strides = [1, 1, 1, 1]} : vector<2x18x16x4xf32> to vector<2x16x16x4xf32>
    %9 = vector.extract_strided_slice %0 {offsets = [0, 0, 2, 0], sizes = [2, 18, 16, 4], strides = [1, 1, 1, 1]} : vector<2x18x24x4xf32> to vector<2x18x16x4xf32>
    %10 = vector.extract_strided_slice %9 {offsets = [0, 0, 0, 0], sizes = [2, 16, 16, 4], strides = [1, 1, 1, 1]} : vector<2x18x16x4xf32> to vector<2x16x16x4xf32>
    %11 = vector.extract_strided_slice %9 {offsets = [0, 1, 0, 0], sizes = [2, 16, 16, 4], strides = [1, 1, 1, 1]} : vector<2x18x16x4xf32> to vector<2x16x16x4xf32>
    %12 = vector.extract_strided_slice %9 {offsets = [0, 2, 0, 0], sizes = [2, 16, 16, 4], strides = [1, 1, 1, 1]} : vector<2x18x16x4xf32> to vector<2x16x16x4xf32>
    %13 = tpu.concatenate %2, %6, %10, %3, %7, %11, %4, %8, %12 in 3 : vector<2x16x16x4xf32>, vector<2x16x16x4xf32>, vector<2x16x16x4xf32>, vector<2x16x16x4xf32>, vector<2x16x16x4xf32>, vector<2x16x16x4xf32>, vector<2x16x16x4xf32>, vector<2x16x16x4xf32>, vector<2x16x16x4xf32> -> vector<2x16x16x36xf32>
    %14 = vector.shape_cast %13 : vector<2x16x16x36xf32> to vector<512x36xf32>
    %c0_3 = arith.constant 0 : index
    %c0_4 = arith.constant 0 : index
    %15 = vector.load %arg2[%c0_3, %c0_4] : memref<36x8xf32, #tpu.memory_space<vmem>>, vector<36x8xf32>
    %cst = arith.constant dense<0.000000e+00> : vector<512x8xf32>
    %16 = tpu.matmul %14, %15, %cst {dimension_numbers = #tpu.dot_dimension_numbers<[1], [0], [0], [1], [0, 0, 1, 1], [], []>} : vector<512x36xf32>, vector<36x8xf32>, vector<512x8xf32> -> vector<512x8xf32>
    %17 = vector.shape_cast %16 : vector<512x8xf32> to vector<2x16x16x8xf32>
    %c0_5 = arith.constant 0 : index
    %c0_6 = arith.constant 0 : index
    %c0_7 = arith.constant 0 : index
    %c0_8 = arith.constant 0 : index
    %18 = vector.load %arg3[%c0_5, %c0_6, %c0_7, %c0_8] : memref<2x16x16x8xf32, #tpu.memory_space<vmem>>, vector<2x16x16x8xf32>
    tpu.vector_store %arg3[%c0_5, %c0_6, %c0_7, %c0_8], %17 {strides = array<i32>} : memref<2x16x16x8xf32, #tpu.memory_space<vmem>>, vector<2x16x16x8xf32>,
    return
  }
  func.func @transform_0(%arg0: i32) -> (i32, i32, i32, i32) {
    %c0_i32 = arith.constant 0 : i32
    %c0_i32_0 = arith.constant 0 : i32
    %c0_i32_1 = arith.constant 0 : i32
    %c0_i32_2 = arith.constant 0 : i32
    return %arg0, %c0_i32, %c0_i32_0, %c0_i32_1 : i32, i32, i32, i32
  }
  func.func @transform_1(%arg0: i32) -> (i32, i32) {
    %c0_i32 = arith.constant 0 : i32
    %c0_i32_0 = arith.constant 0 : i32
    %c0_i32_1 = arith.constant 0 : i32
    return %c0_i32, %c0_i32_0 : i32, i32
  }
  func.func @transform_2(%arg0: i32) -> (i32, i32, i32, i32) {
    %c0_i32 = arith.constant 0 : i32
    %c0_i32_0 = arith.constant 0 : i32
    %c0_i32_1 = arith.constant 0 : i32
    %c0_i32_2 = arith.constant 0 : i32
    return %arg0, %c0_i32, %c0_i32_0, %c0_i32_1 : i32, i32, i32, i32
  }
}

</mosaic_0001>

<llo_original>
// kernel: tpu_custom_call.1
$region0: #{tpu_custom_call.1}
  #allocation0 [shape = 'u32[]', space=smem, size = 0x4, offset = 0x4, fixed_abs, tag = 'smem constant byte address 0x4 - core index']
  #allocation1 [shape = 'u32[144,128]{1,0:T(1,128)}', space=vmem, size = 0x12000, scoped, tag = 'internal scratch']
  %s0 = inlined_call_operand.vmem [shape: f32[2,18,24,4], index: 0, kind: input, shape index: {}]
  %s1 = inlined_call_operand.vmem [shape: f32[36,8], index: 1, kind: input, shape index: {}]
  %s2 = inlined_call_operand.vmem [shape: f32[2,16,16,8], index: 2, kind: output, shape index: {}]
  %s3 = sld [smem:[#allocation0]]
  $region18: #{tpu_custom_call.1} parent=0
    _
  %s5 = ssub.s32 1, %s3
  %s6 = scalar_select 0, %s5, %s3
  // Predicated region
  $region2: #{tpu_custom_call.1} parent=0 // pred_check
    _
  $region3: #{tpu_custom_call.1} parent=0 // pred_check_branch
    %8 = sbr.rel (0) target = $region5
  $region4: #{tpu_custom_call.1} parent=0 // pred_region
    _
  $region5: #{tpu_custom_call.1} parent=0 // pred_fallthru
    _
  // Predicated region
  $region6: #{tpu_custom_call.1} parent=0 // pred_check
    _
  $region7: #{tpu_custom_call.1} parent=0 // pred_check_branch
    %10 = sbr.rel (0) target = $region9
  $region8: #{tpu_custom_call.1} parent=0 // pred_region
    _
  $region9: #{tpu_custom_call.1} parent=0 // pred_fallthru
    _
  %v11 = vld [vmem:[%s0] sm:$0xff]
  %v12 = vld [vmem:[%s0 + $0x8] sm:$0xff]
  %v13 = vld [vmem:[%s0 + $0x10] sm:$0xff]
  %v14 = vld [vmem:[%s0 + $0x18] sm:$0xff]
  %v15 = vld [vmem:[%s0 + $0x20] sm:$0xff]
  %v16 = vld [vmem:[%s0 + $0x28] sm:$0xff]
  %v17 = vld [vmem:[%s0 + $0x30] sm:$0xff]
  %v18 = vld [vmem:[%s0 + $0x38] sm:$0xff]
  %v19 = vld [vmem:[%s0 + $0x40] sm:$0xff]
  %v20 = vld [vmem:[%s0 + $0x48] sm:$0xff]
  %v21 = vld [vmem:[%s0 + $0x50] sm:$0xff]
  %v22 = vld [vmem:[%s0 + $0x58] sm:$0xff]
  %v23 = vld [vmem:[%s0 + $0x60] sm:$0xff]
  %v24 = vld [vmem:[%s0 + $0x68] sm:$0xff]
  %v25 = vld [vmem:[%s0 + $0x70] sm:$0xff]
  %v26 = vld [vmem:[%s0 + $0x78] sm:$0xff]
  %v27 = vld [vmem:[%s0 + $0x80] sm:$0xff]
  %v28 = vld [vmem:[%s0 + $0x88] sm:$0xff]
  %v29 = vld [vmem:[%s0 + $0x90] sm:$0xff]
  %v30 = vld [vmem:[%s0 + $0x98] sm:$0xff]
  %v31 = vld [vmem:[%s0 + $0xa0] sm:$0xff]
  %v32 = vld [vmem:[%s0 + $0xa8] sm:$0xff]
  %v33 = vld [vmem:[%s0 + $0xb0] sm:$0xff]
  %v34 = vld [vmem:[%s0 + $0xb8] sm:$0xff]
  %v35 = vld [vmem:[%s0 + $0xc0] sm:$0xff]
  %v36 = vld [vmem:[%s0 + $0xc8] sm:$0xff]
  %v37 = vld [vmem:[%s0 + $0xd0] sm:$0xff]
  %v38 = vld [vmem:[%s0 + $0xd8] sm:$0xff]
  %v39 = vld [vmem:[%s0 + $0xe0] sm:$0xff]
  %v40 = vld [vmem:[%s0 + $0xe8] sm:$0xff]
  %v41 = vld [vmem:[%s0 + $0xf0] sm:$0xff]
  %v42 = vld [vmem:[%s0 + $0xf8] sm:$0xff]
  %v43 = vld [vmem:[%s0 + $0x100] sm:$0xff]
  %v44 = vld [vmem:[%s0 + $0x108] sm:$0xff]
  %v45 = vld [vmem:[%s0 + $0x110] sm:$0xff]
  %v46 = vld [vmem:[%s0 + $0x118] sm:$0xff]
  %v47 = vld [vmem:[%s0 + $0x120] sm:$0xff]
  %v48 = vld [vmem:[%s0 + $0x128] sm:$0xff]
  %v49 = vld [vmem:[%s0 + $0x130] sm:$0xff]
  %v50 = vld [vmem:[%s0 + $0x138] sm:$0xff]
  %v51 = vld [vmem:[%s0 + $0x140] sm:$0xff]
  %v52 = vld [vmem:[%s0 + $0x148] sm:$0xff]
  %v53 = vld [vmem:[%s0 + $0x150] sm:$0xff]
  %v54 = vld [vmem:[%s0 + $0x158] sm:$0xff]
  %v55 = vld [vmem:[%s0 + $0x160] sm:$0xff]
  %v56 = vld [vmem:[%s0 + $0x168] sm:$0xff]
  %v57 = vld [vmem:[%s0 + $0x170] sm:$0xff]
  %v58 = vld [vmem:[%s0 + $0x178] sm:$0xff]
  %v59 = vld [vmem:[%s0 + $0x180] sm:$0xff]
  %v60 = vld [vmem:[%s0 + $0x188] sm:$0xff]
  %v61 = vld [vmem:[%s0 + $0x190] sm:$0xff]
  %v62 = vld [vmem:[%s0 + $0x198] sm:$0xff]
  %v63 = vld [vmem:[%s0 + $0x1a0] sm:$0xff]
  %v64 = vld [vmem:[%s0 + $0x1a8] sm:$0xff]
  %v65 = vld [vmem:[%s0 + $0x1b0] sm:$0xff]
  %v66 = vld [vmem:[%s0 + $0x1b8] sm:$0xff]
  %v67 = vld [vmem:[%s0 + $0x1c0] sm:$0xff]
  %v68 = vld [vmem:[%s0 + $0x1c8] sm:$0xff]
  %v69 = vld [vmem:[%s0 + $0x1d0] sm:$0xff]
  %v70 = vld [vmem:[%s0 + $0x1d8] sm:$0xff]
  %v71 = vld [vmem:[%s0 + $0x1e0] sm:$0xff]
  %v72 = vld [vmem:[%s0 + $0x1e8] sm:$0xff]
  %v73 = vld [vmem:[%s0 + $0x1f0] sm:$0xff]
  %v74 = vld [vmem:[%s0 + $0x1f8] sm:$0xff]
  %v75 = vld [vmem:[%s0 + $0x200] sm:$0xff]
  %v76 = vld [vmem:[%s0 + $0x208] sm:$0xff]
  %v77 = vld [vmem:[%s0 + $0x210] sm:$0xff]
  %v78 = vld [vmem:[%s0 + $0x218] sm:$0xff]
  %v79 = vld [vmem:[%s0 + $0x220] sm:$0xff]
  %v80 = vld [vmem:[%s0 + $0x228] sm:$0xff]
  %v81 = vld [vmem:[%s0 + $0x230] sm:$0xff]
  %v82 = vld [vmem:[%s0 + $0x238] sm:$0xff]
  %v83 = vld [vmem:[%s0 + $0x240] sm:$0xff]
  %v84 = vld [vmem:[%s0 + $0x248] sm:$0xff]
  %v85 = vld [vmem:[%s0 + $0x250] sm:$0xff]
  %v86 = vld [vmem:[%s0 + $0x258] sm:$0xff]
  %v87 = vld [vmem:[%s0 + $0x260] sm:$0xff]
  %v88 = vld [vmem:[%s0 + $0x268] sm:$0xff]
  %v89 = vld [vmem:[%s0 + $0x270] sm:$0xff]
  %v90 = vld [vmem:[%s0 + $0x278] sm:$0xff]
  %v91 = vld [vmem:[%s0 + $0x280] sm:$0xff]
  %v92 = vld [vmem:[%s0 + $0x288] sm:$0xff]
  %v93 = vld [vmem:[%s0 + $0x290] sm:$0xff]
  %v94 = vld [vmem:[%s0 + $0x298] sm:$0xff]
  %v95 = vld [vmem:[%s0 + $0x2a0] sm:$0xff]
  %v96 = vld [vmem:[%s0 + $0x2a8] sm:$0xff]
  %v97 = vld [vmem:[%s0 + $0x2b0] sm:$0xff]
  %v98 = vld [vmem:[%s0 + $0x2b8] sm:$0xff]
  %v99 = vld [vmem:[%s0 + $0x2c0] sm:$0xff]
  %v100 = vld [vmem:[%s0 + $0x2c8] sm:$0xff]
  %v101 = vld [vmem:[%s0 + $0x2d0] sm:$0xff]
  %v102 = vld [vmem:[%s0 + $0x2d8] sm:$0xff]
  %v103 = vld [vmem:[%s0 + $0x2e0] sm:$0xff]
  %v104 = vld [vmem:[%s0 + $0x2e8] sm:$0xff]
  %v105 = vld [vmem:[%s0 + $0x2f0] sm:$0xff]
  %v106 = vld [vmem:[%s0 + $0x2f8] sm:$0xff]
  %v107 = vld [vmem:[%s0 + $0x300] sm:$0xff]
  %v108 = vld [vmem:[%s0 + $0x308] sm:$0xff]
  %v109 = vld [vmem:[%s0 + $0x310] sm:$0xff]
  %v110 = vld [vmem:[%s0 + $0x318] sm:$0xff]
  %v111 = vld [vmem:[%s0 + $0x320] sm:$0xff]
  %v112 = vld [vmem:[%s0 + $0x328] sm:$0xff]
  %v113 = vld [vmem:[%s0 + $0x330] sm:$0xff]
  %v114 = vld [vmem:[%s0 + $0x338] sm:$0xff]
  %v115 = vld [vmem:[%s0 + $0x340] sm:$0xff]
  %v116 = vld [vmem:[%s0 + $0x348] sm:$0xff]
  %v117 = vld [vmem:[%s0 + $0x350] sm:$0xff]
  %v118 = vld [vmem:[%s0 + $0x358] sm:$0xff]
  %vm215 = vcmask 1046528
  %v216 = vrot.slane %v11, 1
  %v217 = vrot.slane %v12, 1
  %v218 = vsel %vm215, %v216, %v217
  %v219 = vrot.slane %v13, 1
  %v220 = vsel %vm215, %v217, %v219
  %v221 = vrot.slane %v14, 1
  %v222 = vrot.slane %v15, 1
  %v223 = vsel %vm215, %v221, %v222
  %v224 = vrot.slane %v16, 1
  %v225 = vsel %vm215, %v222, %v224
  %v226 = vrot.slane %v17, 1
  %v227 = vrot.slane %v18, 1
  %v228 = vsel %vm215, %v226, %v227
  %v229 = vrot.slane %v19, 1
  %v230 = vsel %vm215, %v227, %v229
  %v231 = vrot.slane %v20, 1
  %v232 = vrot.slane %v21, 1
  %v233 = vsel %vm215, %v231, %v232
  %v234 = vrot.slane %v22, 1
  %v235 = vsel %vm215, %v232, %v234
  %v236 = vrot.slane %v23, 1
  %v237 = vrot.slane %v24, 1
  %v238 = vsel %vm215, %v236, %v237
  %v239 = vrot.slane %v25, 1
  %v240 = vsel %vm215, %v237, %v239
  %v241 = vrot.slane %v26, 1
  %v242 = vrot.slane %v27, 1
  %v243 = vsel %vm215, %v241, %v242
  %v244 = vrot.slane %v28, 1
  %v245 = vsel %vm215, %v242, %v244
  %v246 = vrot.slane %v29, 1
  %v247 = vrot.slane %v30, 1
  %v248 = vsel %vm215, %v246, %v247
  %v249 = vrot.slane %v31, 1
  %v250 = vsel %vm215, %v247, %v249
  %v251 = vrot.slane %v32, 1
  %v252 = vrot.slane %v33, 1
  %v253 = vsel %vm215, %v251, %v252
  %v254 = vrot.slane %v34, 1
  %v255 = vsel %vm215, %v252, %v254
  %v256 = vrot.slane %v35, 1
  %v257 = vrot.slane %v36, 1
  %v258 = vsel %vm215, %v256, %v257
  %v259 = vrot.slane %v37, 1
  %v260 = vsel %vm215, %v257, %v259
  %v261 = vrot.slane %v38, 1
  %v262 = vrot.slane %v39, 1
  %v263 = vsel %vm215, %v261, %v262
  %v264 = vrot.slane %v40, 1
  %v265 = vsel %vm215, %v262, %v264
  %v266 = vrot.slane %v41, 1
  %v267 = vrot.slane %v42, 1
  %v268 = vsel %vm215, %v266, %v267
  %v269 = vrot.slane %v43, 1
  %v270 = vsel %vm215, %v267, %v269
  %v271 = vrot.slane %v44, 1
  %v272 = vrot.slane %v45, 1
  %v273 = vsel %vm215, %v271, %v272
  %v274 = vrot.slane %v46, 1
  %v275 = vsel %vm215, %v272, %v274
  %v276 = vrot.slane %v47, 1
  %v277 = vrot.slane %v48, 1
  %v278 = vsel %vm215, %v276, %v277
  %v279 = vrot.slane %v49, 1
  %v280 = vsel %vm215, %v277, %v279
  %v281 = vrot.slane %v50, 1
  %v282 = vrot.slane %v51, 1
  %v283 = vsel %vm215, %v281, %v282
  %v284 = vrot.slane %v52, 1
  %v285 = vsel %vm215, %v282, %v284
  %v286 = vrot.slane %v53, 1
  %v287 = vrot.slane %v54, 1
  %v288 = vsel %vm215, %v286, %v287
  %v289 = vrot.slane %v55, 1
  %v290 = vsel %vm215, %v287, %v289
  %v291 = vrot.slane %v56, 1
  %v292 = vrot.slane %v57, 1
  %v293 = vsel %vm215, %v291, %v292
  %v294 = vrot.slane %v58, 1
  %v295 = vsel %vm215, %v292, %v294
  %v296 = vrot.slane %v65, 1
  %v297 = vrot.slane %v66, 1
  %v298 = vsel %vm215, %v296, %v297
  %v299 = vrot.slane %v67, 1
  %v300 = vsel %vm215, %v297, %v299
  %v301 = vrot.slane %v68, 1
  %v302 = vrot.slane %v69, 1
  %v303 = vsel %vm215, %v301, %v302
  %v304 = vrot.slane %v70, 1
  %v305 = vsel %vm215, %v302, %v304
  %v306 = vrot.slane %v71, 1
  %v307 = vrot.slane %v72, 1
  %v308 = vsel %vm215, %v306, %v307
  %v309 = vrot.slane %v73, 1
  %v310 = vsel %vm215, %v307, %v309
  %v311 = vrot.slane %v74, 1
  %v312 = vrot.slane %v75, 1
  %v313 = vsel %vm215, %v311, %v312
  %v314 = vrot.slane %v76, 1
  %v315 = vsel %vm215, %v312, %v314
  %v316 = vrot.slane %v77, 1
  %v317 = vrot.slane %v78, 1
  %v318 = vsel %vm215, %v316, %v317
  %v319 = vrot.slane %v79, 1
  %v320 = vsel %vm215, %v317, %v319
  %v321 = vrot.slane %v80, 1
  %v322 = vrot.slane %v81, 1
  %v323 = vsel %vm215, %v321, %v322
  %v324 = vrot.slane %v82, 1
  %v325 = vsel %vm215, %v322, %v324
  %v326 = vrot.slane %v83, 1
  %v327 = vrot.slane %v84, 1
  %v328 = vsel %vm215, %v326, %v327
  %v329 = vrot.slane %v85, 1
  %v330 = vsel %vm215, %v327, %v329
  %v331 = vrot.slane %v86, 1
  %v332 = vrot.slane %v87, 1
  %v333 = vsel %vm215, %v331, %v332
  %v334 = vrot.slane %v88, 1
  %v335 = vsel %vm215, %v332, %v334
  %v336 = vrot.slane %v89, 1
  %v337 = vrot.slane %v90, 1
  %v338 = vsel %vm215, %v336, %v337
  %v339 = vrot.slane %v91, 1
  %v340 = vsel %vm215, %v337, %v339
  %v341 = vrot.slane %v92, 1
  %v342 = vrot.slane %v93, 1
  %v343 = vsel %vm215, %v341, %v342
  %v344 = vrot.slane %v94, 1
  %v345 = vsel %vm215, %v342, %v344
  %v346 = vrot.slane %v95, 1
  %v347 = vrot.slane %v96, 1
  %v348 = vsel %vm215, %v346, %v347
  %v349 = vrot.slane %v97, 1
  %v350 = vsel %vm215, %v347, %v349
  %v351 = vrot.slane %v98, 1
  %v352 = vrot.slane %v99, 1
  %v353 = vsel %vm215, %v351, %v352
  %v354 = vrot.slane %v100, 1
  %v355 = vsel %vm215, %v352, %v354
  %v356 = vrot.slane %v101, 1
  %v357 = vrot.slane %v102, 1
  %v358 = vsel %vm215, %v356, %v357
  %v359 = vrot.slane %v103, 1
  %v360 = vsel %vm215, %v357, %v359
  %v361 = vrot.slane %v104, 1
  %v362 = vrot.slane %v105, 1
  %v363 = vsel %vm215, %v361, %v362
  %v364 = vrot.slane %v106, 1
  %v365 = vsel %vm215, %v362, %v364
  %v366 = vrot.slane %v107, 1
  %v367 = vrot.slane %v108, 1
  %v368 = vsel %vm215, %v366, %v367
  %v369 = vrot.slane %v109, 1
  %v370 = vsel %vm215, %v367, %v369
  %v371 = vrot.slane %v110, 1
  %v372 = vrot.slane %v111, 1
  %v373 = vsel %vm215, %v371, %v372
  %v374 = vrot.slane %v112, 1
  %v375 = vsel %vm215, %v372, %v374
  %376 = vrot.lane.b32.xlu0 %v218, 4
  %v377 = vpop.permute.xlu0 %376
  %378 = vrot.lane.b32.xlu0 %v220, 4
  %v379 = vpop.permute.xlu0 %378
  %380 = vrot.lane.b32.xlu0 %v223, 4
  %v381 = vpop.permute.xlu0 %380
  %382 = vrot.lane.b32.xlu0 %v225, 4
  %v383 = vpop.permute.xlu0 %382
  %384 = vrot.lane.b32.xlu0 %v228, 4
  %v385 = vpop.permute.xlu0 %384
  %386 = vrot.lane.b32.xlu0 %v230, 4
  %v387 = vpop.permute.xlu0 %386
  %388 = vrot.lane.b32.xlu0 %v233, 4
  %v389 = vpop.permute.xlu0 %388
  %390 = vrot.lane.b32.xlu0 %v235, 4
  %v391 = vpop.permute.xlu0 %390
  %392 = vrot.lane.b32.xlu0 %v238, 4
  %v393 = vpop.permute.xlu0 %392
  %394 = vrot.lane.b32.xlu0 %v240, 4
  %v395 = vpop.permute.xlu0 %394
  %396 = vrot.lane.b32.xlu0 %v243, 4
  %v397 = vpop.permute.xlu0 %396
  %398 = vrot.lane.b32.xlu0 %v245, 4
  %v399 = vpop.permute.xlu0 %398
  %400 = vrot.lane.b32.xlu0 %v248, 4
  %v401 = vpop.permute.xlu0 %400
  %402 = vrot.lane.b32.xlu0 %v250, 4
  %v403 = vpop.permute.xlu0 %402
  %404 = vrot.lane.b32.xlu0 %v253, 4
  %v405 = vpop.permute.xlu0 %404
  %406 = vrot.lane.b32.xlu0 %v255, 4
  %v407 = vpop.permute.xlu0 %406
  %408 = vrot.lane.b32.xlu0 %v258, 4
  %v409 = vpop.permute.xlu0 %408
  %410 = vrot.lane.b32.xlu0 %v260, 4
  %v411 = vpop.permute.xlu0 %410
  %412 = vrot.lane.b32.xlu0 %v263, 4
  %v413 = vpop.permute.xlu0 %412
  %414 = vrot.lane.b32.xlu0 %v265, 4
  %v415 = vpop.permute.xlu0 %414
  %416 = vrot.lane.b32.xlu0 %v268, 4
  %v417 = vpop.permute.xlu0 %416
  %418 = vrot.lane.b32.xlu0 %v270, 4
  %v419 = vpop.permute.xlu0 %418
  %420 = vrot.lane.b32.xlu0 %v273, 4
  %v421 = vpop.permute.xlu0 %420
  %422 = vrot.lane.b32.xlu0 %v275, 4
  %v423 = vpop.permute.xlu0 %422
  %424 = vrot.lane.b32.xlu0 %v278, 4
  %v425 = vpop.permute.xlu0 %424
  %426 = vrot.lane.b32.xlu0 %v280, 4
  %v427 = vpop.permute.xlu0 %426
  %428 = vrot.lane.b32.xlu0 %v283, 4
  %v429 = vpop.permute.xlu0 %428
  %430 = vrot.lane.b32.xlu0 %v285, 4
  %v431 = vpop.permute.xlu0 %430
  %432 = vrot.lane.b32.xlu0 %v288, 4
  %v433 = vpop.permute.xlu0 %432
  %434 = vrot.lane.b32.xlu0 %v290, 4
  %v435 = vpop.permute.xlu0 %434
  %436 = vrot.lane.b32.xlu0 %v293, 4
  %v437 = vpop.permute.xlu0 %436
  %438 = vrot.lane.b32.xlu0 %v295, 4
  %v439 = vpop.permute.xlu0 %438
  %440 = vrot.lane.b32.xlu0 %v298, 4
  %v441 = vpop.permute.xlu0 %440
  %442 = vrot.lane.b32.xlu0 %v300, 4
  %v443 = vpop.permute.xlu0 %442
  %444 = vrot.lane.b32.xlu0 %v303, 4
  %v445 = vpop.permute.xlu0 %444
  %446 = vrot.lane.b32.xlu0 %v305, 4
  %v447 = vpop.permute.xlu0 %446
  %448 = vrot.lane.b32.xlu0 %v308, 4
  %v449 = vpop.permute.xlu0 %448
  %450 = vrot.lane.b32.xlu0 %v310, 4
  %v451 = vpop.permute.xlu0 %450
  %452 = vrot.lane.b32.xlu0 %v313, 4
  %v453 = vpop.permute.xlu0 %452
  %454 = vrot.lane.b32.xlu0 %v315, 4
  %v455 = vpop.permute.xlu0 %454
  %456 = vrot.lane.b32.xlu0 %v318, 4
  %v457 = vpop.permute.xlu0 %456
  %458 = vrot.lane.b32.xlu0 %v320, 4
  %v459 = vpop.permute.xlu0 %458
  %460 = vrot.lane.b32.xlu0 %v323, 4
  %v461 = vpop.permute.xlu0 %460
  %462 = vrot.lane.b32.xlu0 %v325, 4
  %v463 = vpop.permute.xlu0 %462
  %464 = vrot.lane.b32.xlu0 %v328, 4
  %v465 = vpop.permute.xlu0 %464
  %466 = vrot.lane.b32.xlu0 %v330, 4
  %v467 = vpop.permute.xlu0 %466
  %468 = vrot.lane.b32.xlu0 %v333, 4
  %v469 = vpop.permute.xlu0 %468
  %470 = vrot.lane.b32.xlu0 %v335, 4
  %v471 = vpop.permute.xlu0 %470
  %472 = vrot.lane.b32.xlu0 %v338, 4
  %v473 = vpop.permute.xlu0 %472
  %474 = vrot.lane.b32.xlu0 %v340, 4
  %v475 = vpop.permute.xlu0 %474
  %476 = vrot.lane.b32.xlu0 %v343, 4
  %v477 = vpop.permute.xlu0 %476
  %478 = vrot.lane.b32.xlu0 %v345, 4
  %v479 = vpop.permute.xlu0 %478
  %480 = vrot.lane.b32.xlu0 %v348, 4
  %v481 = vpop.permute.xlu0 %480
  %482 = vrot.lane.b32.xlu0 %v350, 4
  %v483 = vpop.permute.xlu0 %482
  %484 = vrot.lane.b32.xlu0 %v353, 4
  %v485 = vpop.permute.xlu0 %484
  %486 = vrot.lane.b32.xlu0 %v355, 4
  %v487 = vpop.permute.xlu0 %486
  %488 = vrot.lane.b32.xlu0 %v358, 4
  %v489 = vpop.permute.xlu0 %488
  %490 = vrot.lane.b32.xlu0 %v360, 4
  %v491 = vpop.permute.xlu0 %490
  %492 = vrot.lane.b32.xlu0 %v363, 4
  %v493 = vpop.permute.xlu0 %492
  %494 = vrot.lane.b32.xlu0 %v365, 4
  %v495 = vpop.permute.xlu0 %494
  %496 = vrot.lane.b32.xlu0 %v368, 4
  %v497 = vpop.permute.xlu0 %496
  %498 = vrot.lane.b32.xlu0 %v370, 4
  %v499 = vpop.permute.xlu0 %498
  %500 = vrot.lane.b32.xlu0 %v373, 4
  %v501 = vpop.permute.xlu0 %500
  %502 = vrot.lane.b32.xlu0 %v375, 4
  %v503 = vpop.permute.xlu0 %502
  %vm568 = vcmask 1045504
  %v569 = vrot.slane %v11, 2
  %v570 = vrot.slane %v12, 2
  %v571 = vsel %vm568, %v569, %v570
  %v572 = vrot.slane %v13, 2
  %v573 = vsel %vm568, %v570, %v572
  %v574 = vrot.slane %v14, 2
  %v575 = vrot.slane %v15, 2
  %v576 = vsel %vm568, %v574, %v575
  %v577 = vrot.slane %v16, 2
  %v578 = vsel %vm568, %v575, %v577
  %v579 = vrot.slane %v17, 2
  %v580 = vrot.slane %v18, 2
  %v581 = vsel %vm568, %v579, %v580
  %v582 = vrot.slane %v19, 2
  %v583 = vsel %vm568, %v580, %v582
  %v584 = vrot.slane %v20, 2
  %v585 = vrot.slane %v21, 2
  %v586 = vsel %vm568, %v584, %v585
  %v587 = vrot.slane %v22, 2
  %v588 = vsel %vm568, %v585, %v587
  %v589 = vrot.slane %v23, 2
  %v590 = vrot.slane %v24, 2
  %v591 = vsel %vm568, %v589, %v590
  %v592 = vrot.slane %v25, 2
  %v593 = vsel %vm568, %v590, %v592
  %v594 = vrot.slane %v26, 2
  %v595 = vrot.slane %v27, 2
  %v596 = vsel %vm568, %v594, %v595
  %v597 = vrot.slane %v28, 2
  %v598 = vsel %vm568, %v595, %v597
  %v599 = vrot.slane %v29, 2
  %v600 = vrot.slane %v30, 2
  %v601 = vsel %vm568, %v599, %v600
  %v602 = vrot.slane %v31, 2
  %v603 = vsel %vm568, %v600, %v602
  %v604 = vrot.slane %v32, 2
  %v605 = vrot.slane %v33, 2
  %v606 = vsel %vm568, %v604, %v605
  %v607 = vrot.slane %v34, 2
  %v608 = vsel %vm568, %v605, %v607
  %v609 = vrot.slane %v35, 2
  %v610 = vrot.slane %v36, 2
  %v611 = vsel %vm568, %v609, %v610
  %v612 = vrot.slane %v37, 2
  %v613 = vsel %vm568, %v610, %v612
  %v614 = vrot.slane %v38, 2
  %v615 = vrot.slane %v39, 2
  %v616 = vsel %vm568, %v614, %v615
  %v617 = vrot.slane %v40, 2
  %v618 = vsel %vm568, %v615, %v617
  %v619 = vrot.slane %v41, 2
  %v620 = vrot.slane %v42, 2
  %v621 = vsel %vm568, %v619, %v620
  %v622 = vrot.slane %v43, 2
  %v623 = vsel %vm568, %v620, %v622
  %v624 = vrot.slane %v44, 2
  %v625 = vrot.slane %v45, 2
  %v626 = vsel %vm568, %v624, %v625
  %v627 = vrot.slane %v46, 2
  %v628 = vsel %vm568, %v625, %v627
  %v629 = vrot.slane %v47, 2
  %v630 = vrot.slane %v48, 2
  %v631 = vsel %vm568, %v629, %v630
  %v632 = vrot.slane %v49, 2
  %v633 = vsel %vm568, %v630, %v632
  %v634 = vrot.slane %v50, 2
  %v635 = vrot.slane %v51, 2
  %v636 = vsel %vm568, %v634, %v635
  %v637 = vrot.slane %v52, 2
  %v638 = vsel %vm568, %v635, %v637
  %v639 = vrot.slane %v53, 2
  %v640 = vrot.slane %v54, 2
  %v641 = vsel %vm568, %v639, %v640
  %v642 = vrot.slane %v55, 2
  %v643 = vsel %vm568, %v640, %v642
  %v644 = vrot.slane %v56, 2
  %v645 = vrot.slane %v57, 2
  %v646 = vsel %vm568, %v644, %v645
  %v647 = vrot.slane %v58, 2
  %v648 = vsel %vm568, %v645, %v647
  %v649 = vrot.slane %v65, 2
  %v650 = vrot.slane %v66, 2
  %v651 = vsel %vm568, %v649, %v650
  %v652 = vrot.slane %v67, 2
  %v653 = vsel %vm568, %v650, %v652
  %v654 = vrot.slane %v68, 2
  %v655 = vrot.slane %v69, 2
  %v656 = vsel %vm568, %v654, %v655
  %v657 = vrot.slane %v70, 2
  %v658 = vsel %vm568, %v655, %v657
  %v659 = vrot.slane %v71, 2
  %v660 = vrot.slane %v72, 2
  %v661 = vsel %vm568, %v659, %v660
  %v662 = vrot.slane %v73, 2
  %v663 = vsel %vm568, %v660, %v662
  %v664 = vrot.slane %v74, 2
  %v665 = vrot.slane %v75, 2
  %v666 = vsel %vm568, %v664, %v665
  %v667 = vrot.slane %v76, 2
  %v668 = vsel %vm568, %v665, %v667
  %v669 = vrot.slane %v77, 2
  %v670 = vrot.slane %v78, 2
  %v671 = vsel %vm568, %v669, %v670
  %v672 = vrot.slane %v79, 2
  %v673 = vsel %vm568, %v670, %v672
  %v674 = vrot.slane %v80, 2
  %v675 = vrot.slane %v81, 2
  %v676 = vsel %vm568, %v674, %v675
  %v677 = vrot.slane %v82, 2
  %v678 = vsel %vm568, %v675, %v677
  %v679 = vrot.slane %v83, 2
  %v680 = vrot.slane %v84, 2
  %v681 = vsel %vm568, %v679, %v680
  %v682 = vrot.slane %v85, 2
  %v683 = vsel %vm568, %v680, %v682
  %v684 = vrot.slane %v86, 2
  %v685 = vrot.slane %v87, 2
  %v686 = vsel %vm568, %v684, %v685
  %v687 = vrot.slane %v88, 2
  %v688 = vsel %vm568, %v685, %v687
  %v689 = vrot.slane %v89, 2
  %v690 = vrot.slane %v90, 2
  %v691 = vsel %vm568, %v689, %v690
  %v692 = vrot.slane %v91, 2
  %v693 = vsel %vm568, %v690, %v692
  %v694 = vrot.slane %v92, 2
  %v695 = vrot.slane %v93, 2
  %v696 = vsel %vm568, %v694, %v695
  %v697 = vrot.slane %v94, 2
  %v698 = vsel %vm568, %v695, %v697
  %v699 = vrot.slane %v95, 2
  %v700 = vrot.slane %v96, 2
  %v701 = vsel %vm568, %v699, %v700
  %v702 = vrot.slane %v97, 2
  %v703 = vsel %vm568, %v700, %v702
  %v704 = vrot.slane %v98, 2
  %v705 = vrot.slane %v99, 2
  %v706 = vsel %vm568, %v704, %v705
  %v707 = vrot.slane %v100, 2
  %v708 = vsel %vm568, %v705, %v707
  %v709 = vrot.slane %v101, 2
  %v710 = vrot.slane %v102, 2
  %v711 = vsel %vm568, %v709, %v710
  %v712 = vrot.slane %v103, 2
  %v713 = vsel %vm568, %v710, %v712
  %v714 = vrot.slane %v104, 2
  %v715 = vrot.slane %v105, 2
  %v716 = vsel %vm568, %v714, %v715
  %v717 = vrot.slane %v106, 2
  %v718 = vsel %vm568, %v715, %v717
  %v719 = vrot.slane %v107, 2
  %v720 = vrot.slane %v108, 2
  %v721 = vsel %vm568, %v719, %v720
  %v722 = vrot.slane %v109, 2
  %v723 = vsel %vm568, %v720, %v722
  %v724 = vrot.slane %v110, 2
  %v725 = vrot.slane %v111, 2
  %v726 = vsel %vm568, %v724, %v725
  %v727 = vrot.slane %v112, 2
  %v728 = vsel %vm568, %v725, %v727
  %729 = vrot.lane.b32.xlu0 %v571, 8
  %v730 = vpop.permute.xlu0 %729
  %731 = vrot.lane.b32.xlu0 %v573, 8
  %v732 = vpop.permute.xlu0 %731
  %733 = vrot.lane.b32.xlu0 %v576, 8
  %v734 = vpop.permute.xlu0 %733
  %735 = vrot.lane.b32.xlu0 %v578, 8
  %v736 = vpop.permute.xlu0 %735
  %737 = vrot.lane.b32.xlu0 %v581, 8
  %v738 = vpop.permute.xlu0 %737
  %739 = vrot.lane.b32.xlu0 %v583, 8
  %v740 = vpop.permute.xlu0 %739
  %741 = vrot.lane.b32.xlu0 %v586, 8
  %v742 = vpop.permute.xlu0 %741
  %743 = vrot.lane.b32.xlu0 %v588, 8
  %v744 = vpop.permute.xlu0 %743
  %745 = vrot.lane.b32.xlu0 %v591, 8
  %v746 = vpop.permute.xlu0 %745
  %747 = vrot.lane.b32.xlu0 %v593, 8
  %v748 = vpop.permute.xlu0 %747
  %749 = vrot.lane.b32.xlu0 %v596, 8
  %v750 = vpop.permute.xlu0 %749
  %751 = vrot.lane.b32.xlu0 %v598, 8
  %v752 = vpop.permute.xlu0 %751
  %753 = vrot.lane.b32.xlu0 %v601, 8
  %v754 = vpop.permute.xlu0 %753
  %755 = vrot.lane.b32.xlu0 %v603, 8
  %v756 = vpop.permute.xlu0 %755
  %757 = vrot.lane.b32.xlu0 %v606, 8
  %v758 = vpop.permute.xlu0 %757
  %759 = vrot.lane.b32.xlu0 %v608, 8
  %v760 = vpop.permute.xlu0 %759
  %761 = vrot.lane.b32.xlu0 %v611, 8
  %v762 = vpop.permute.xlu0 %761
  %763 = vrot.lane.b32.xlu0 %v613, 8
  %v764 = vpop.permute.xlu0 %763
  %765 = vrot.lane.b32.xlu0 %v616, 8
  %v766 = vpop.permute.xlu0 %765
  %767 = vrot.lane.b32.xlu0 %v618, 8
  %v768 = vpop.permute.xlu0 %767
  %769 = vrot.lane.b32.xlu0 %v621, 8
  %v770 = vpop.permute.xlu0 %769
  %771 = vrot.lane.b32.xlu0 %v623, 8
  %v772 = vpop.permute.xlu0 %771
  %773 = vrot.lane.b32.xlu0 %v626, 8
  %v774 = vpop.permute.xlu0 %773
  %775 = vrot.lane.b32.xlu0 %v628, 8
  %v776 = vpop.permute.xlu0 %775
  %777 = vrot.lane.b32.xlu0 %v631, 8
  %v778 = vpop.permute.xlu0 %777
  %779 = vrot.lane.b32.xlu0 %v633, 8
  %v780 = vpop.permute.xlu0 %779
  %781 = vrot.lane.b32.xlu0 %v636, 8
  %v782 = vpop.permute.xlu0 %781
  %783 = vrot.lane.b32.xlu0 %v638, 8
  %v784 = vpop.permute.xlu0 %783
  %785 = vrot.lane.b32.xlu0 %v641, 8
  %v786 = vpop.permute.xlu0 %785
  %787 = vrot.lane.b32.xlu0 %v643, 8
  %v788 = vpop.permute.xlu0 %787
  %789 = vrot.lane.b32.xlu0 %v646, 8
  %v790 = vpop.permute.xlu0 %789
  %791 = vrot.lane.b32.xlu0 %v648, 8
  %v792 = vpop.permute.xlu0 %791
  %793 = vrot.lane.b32.xlu0 %v651, 8
  %v794 = vpop.permute.xlu0 %793
  %795 = vrot.lane.b32.xlu0 %v653, 8
  %v796 = vpop.permute.xlu0 %795
  %797 = vrot.lane.b32.xlu0 %v656, 8
  %v798 = vpop.permute.xlu0 %797
  %799 = vrot.lane.b32.xlu0 %v658, 8
  %v800 = vpop.permute.xlu0 %799
  %801 = vrot.lane.b32.xlu0 %v661, 8
  %v802 = vpop.permute.xlu0 %801
  %803 = vrot.lane.b32.xlu0 %v663, 8
  %v804 = vpop.permute.xlu0 %803
  %805 = vrot.lane.b32.xlu0 %v666, 8
  %v806 = vpop.permute.xlu0 %805
  %807 = vrot.lane.b32.xlu0 %v668, 8
  %v808 = vpop.permute.xlu0 %807
  %809 = vrot.lane.b32.xlu0 %v671, 8
  %v810 = vpop.permute.xlu0 %809
  %811 = vrot.lane.b32.xlu0 %v673, 8
  %v812 = vpop.permute.xlu0 %811
  %813 = vrot.lane.b32.xlu0 %v676, 8
  %v814 = vpop.permute.xlu0 %813
  %815 = vrot.lane.b32.xlu0 %v678, 8
  %v816 = vpop.permute.xlu0 %815
  %817 = vrot.lane.b32.xlu0 %v681, 8
  %v818 = vpop.permute.xlu0 %817
  %819 = vrot.lane.b32.xlu0 %v683, 8
  %v820 = vpop.permute.xlu0 %819
  %821 = vrot.lane.b32.xlu0 %v686, 8
  %v822 = vpop.permute.xlu0 %821
  %823 = vrot.lane.b32.xlu0 %v688, 8
  %v824 = vpop.permute.xlu0 %823
  %825 = vrot.lane.b32.xlu0 %v691, 8
  %v826 = vpop.permute.xlu0 %825
  %827 = vrot.lane.b32.xlu0 %v693, 8
  %v828 = vpop.permute.xlu0 %827
  %829 = vrot.lane.b32.xlu0 %v696, 8
  %v830 = vpop.permute.xlu0 %829
  %831 = vrot.lane.b32.xlu0 %v698, 8
  %v832 = vpop.permute.xlu0 %831
  %833 = vrot.lane.b32.xlu0 %v701, 8
  %v834 = vpop.permute.xlu0 %833
  %835 = vrot.lane.b32.xlu0 %v703, 8
  %v836 = vpop.permute.xlu0 %835
  %837 = vrot.lane.b32.xlu0 %v706, 8
  %v838 = vpop.permute.xlu0 %837
  %839 = vrot.lane.b32.xlu0 %v708, 8
  %v840 = vpop.permute.xlu0 %839
  %841 = vrot.lane.b32.xlu0 %v711, 8
  %v842 = vpop.permute.xlu0 %841
  %843 = vrot.lane.b32.xlu0 %v713, 8
  %v844 = vpop.permute.xlu0 %843
  %845 = vrot.lane.b32.xlu0 %v716, 8
  %v846 = vpop.permute.xlu0 %845
  %847 = vrot.lane.b32.xlu0 %v718, 8
  %v848 = vpop.permute.xlu0 %847
  %849 = vrot.lane.b32.xlu0 %v721, 8
  %v850 = vpop.permute.xlu0 %849
  %851 = vrot.lane.b32.xlu0 %v723, 8
  %v852 = vpop.permute.xlu0 %851
  %853 = vrot.lane.b32.xlu0 %v726, 8
  %v854 = vpop.permute.xlu0 %853
  %855 = vrot.lane.b32.xlu0 %v728, 8
  %v856 = vpop.permute.xlu0 %855
  %925 = vrot.lane.b32.xlu0 %v14, 12
  %v926 = vpop.permute.xlu0 %925
  %927 = vrot.lane.b32.xlu0 %v15, 12
  %v928 = vpop.permute.xlu0 %927
  %929 = vrot.lane.b32.xlu0 %v17, 12
  %v930 = vpop.permute.xlu0 %929
  %931 = vrot.lane.b32.xlu0 %v18, 12
  %v932 = vpop.permute.xlu0 %931
  %933 = vrot.lane.b32.xlu0 %v20, 12
  %v934 = vpop.permute.xlu0 %933
  %935 = vrot.lane.b32.xlu0 %v21, 12
  %v936 = vpop.permute.xlu0 %935
  %937 = vrot.lane.b32.xlu0 %v23, 12
  %v938 = vpop.permute.xlu0 %937
  %939 = vrot.lane.b32.xlu0 %v24, 12
  %v940 = vpop.permute.xlu0 %939
  %941 = vrot.lane.b32.xlu0 %v26, 12
  %v942 = vpop.permute.xlu0 %941
  %943 = vrot.lane.b32.xlu0 %v27, 12
  %v944 = vpop.permute.xlu0 %943
  %945 = vrot.lane.b32.xlu0 %v29, 12
  %v946 = vpop.permute.xlu0 %945
  %947 = vrot.lane.b32.xlu0 %v30, 12
  %v948 = vpop.permute.xlu0 %947
  %949 = vrot.lane.b32.xlu0 %v32, 12
  %v950 = vpop.permute.xlu0 %949
  %951 = vrot.lane.b32.xlu0 %v33, 12
  %v952 = vpop.permute.xlu0 %951
  %953 = vrot.lane.b32.xlu0 %v35, 12
  %v954 = vpop.permute.xlu0 %953
  %955 = vrot.lane.b32.xlu0 %v36, 12
  %v956 = vpop.permute.xlu0 %955
  %957 = vrot.lane.b32.xlu0 %v38, 12
  %v958 = vpop.permute.xlu0 %957
  %959 = vrot.lane.b32.xlu0 %v39, 12
  %v960 = vpop.permute.xlu0 %959
  %961 = vrot.lane.b32.xlu0 %v41, 12
  %v962 = vpop.permute.xlu0 %961
  %963 = vrot.lane.b32.xlu0 %v42, 12
  %v964 = vpop.permute.xlu0 %963
  %965 = vrot.lane.b32.xlu0 %v44, 12
  %v966 = vpop.permute.xlu0 %965
  %967 = vrot.lane.b32.xlu0 %v45, 12
  %v968 = vpop.permute.xlu0 %967
  %969 = vrot.lane.b32.xlu0 %v47, 12
  %v970 = vpop.permute.xlu0 %969
  %971 = vrot.lane.b32.xlu0 %v48, 12
  %v972 = vpop.permute.xlu0 %971
  %973 = vrot.lane.b32.xlu0 %v50, 12
  %v974 = vpop.permute.xlu0 %973
  %975 = vrot.lane.b32.xlu0 %v51, 12
  %v976 = vpop.permute.xlu0 %975
  %977 = vrot.lane.b32.xlu0 %v53, 12
  %v978 = vpop.permute.xlu0 %977
  %979 = vrot.lane.b32.xlu0 %v54, 12
  %v980 = vpop.permute.xlu0 %979
  %981 = vrot.lane.b32.xlu0 %v56, 12
  %v982 = vpop.permute.xlu0 %981
  %983 = vrot.lane.b32.xlu0 %v57, 12
  %v984 = vpop.permute.xlu0 %983
  %985 = vrot.lane.b32.xlu0 %v59, 12
  %v986 = vpop.permute.xlu0 %985
  %987 = vrot.lane.b32.xlu0 %v60, 12
  %v988 = vpop.permute.xlu0 %987
  %989 = vrot.lane.b32.xlu0 %v68, 12
  %v990 = vpop.permute.xlu0 %989
  %991 = vrot.lane.b32.xlu0 %v69, 12
  %v992 = vpop.permute.xlu0 %991
  %993 = vrot.lane.b32.xlu0 %v71, 12
  %v994 = vpop.permute.xlu0 %993
  %995 = vrot.lane.b32.xlu0 %v72, 12
  %v996 = vpop.permute.xlu0 %995
  %997 = vrot.lane.b32.xlu0 %v74, 12
  %v998 = vpop.permute.xlu0 %997
  %999 = vrot.lane.b32.xlu0 %v75, 12
  %v1000 = vpop.permute.xlu0 %999
  %1001 = vrot.lane.b32.xlu0 %v77, 12
  %v1002 = vpop.permute.xlu0 %1001
  %1003 = vrot.lane.b32.xlu0 %v78, 12
  %v1004 = vpop.permute.xlu0 %1003
  %1005 = vrot.lane.b32.xlu0 %v80, 12
  %v1006 = vpop.permute.xlu0 %1005
  %1007 = vrot.lane.b32.xlu0 %v81, 12
  %v1008 = vpop.permute.xlu0 %1007
  %1009 = vrot.lane.b32.xlu0 %v83, 12
  %v1010 = vpop.permute.xlu0 %1009
  %1011 = vrot.lane.b32.xlu0 %v84, 12
  %v1012 = vpop.permute.xlu0 %1011
  %1013 = vrot.lane.b32.xlu0 %v86, 12
  %v1014 = vpop.permute.xlu0 %1013
  %1015 = vrot.lane.b32.xlu0 %v87, 12
  %v1016 = vpop.permute.xlu0 %1015
  %1017 = vrot.lane.b32.xlu0 %v89, 12
  %v1018 = vpop.permute.xlu0 %1017
  %1019 = vrot.lane.b32.xlu0 %v90, 12
  %v1020 = vpop.permute.xlu0 %1019
  %1021 = vrot.lane.b32.xlu0 %v92, 12
  %v1022 = vpop.permute.xlu0 %1021
  %1023 = vrot.lane.b32.xlu0 %v93, 12
  %v1024 = vpop.permute.xlu0 %1023
  %1025 = vrot.lane.b32.xlu0 %v95, 12
  %v1026 = vpop.permute.xlu0 %1025
  %1027 = vrot.lane.b32.xlu0 %v96, 12
  %v1028 = vpop.permute.xlu0 %1027
  %1029 = vrot.lane.b32.xlu0 %v98, 12
  %v1030 = vpop.permute.xlu0 %1029
  %1031 = vrot.lane.b32.xlu0 %v99, 12
  %v1032 = vpop.permute.xlu0 %1031
  %1033 = vrot.lane.b32.xlu0 %v101, 12
  %v1034 = vpop.permute.xlu0 %1033
  %1035 = vrot.lane.b32.xlu0 %v102, 12
  %v1036 = vpop.permute.xlu0 %1035
  %1037 = vrot.lane.b32.xlu0 %v104, 12
  %v1038 = vpop.permute.xlu0 %1037
  %1039 = vrot.lane.b32.xlu0 %v105, 12
  %v1040 = vpop.permute.xlu0 %1039
  %1041 = vrot.lane.b32.xlu0 %v107, 12
  %v1042 = vpop.permute.xlu0 %1041
  %1043 = vrot.lane.b32.xlu0 %v108, 12
  %v1044 = vpop.permute.xlu0 %1043
  %1045 = vrot.lane.b32.xlu0 %v110, 12
  %v1046 = vpop.permute.xlu0 %1045
  %1047 = vrot.lane.b32.xlu0 %v111, 12
  %v1048 = vpop.permute.xlu0 %1047
  %1049 = vrot.lane.b32.xlu0 %v113, 12
  %v1050 = vpop.permute.xlu0 %1049
  %1051 = vrot.lane.b32.xlu0 %v114, 12
  %v1052 = vpop.permute.xlu0 %1051
  %v1119 = vrot.slane %v59, 1
  %v1120 = vrot.slane %v60, 1
  %v1121 = vsel %vm215, %v1119, %v1120
  %v1122 = vrot.slane %v61, 1
  %v1123 = vsel %vm215, %v1120, %v1122
  %v1124 = vrot.slane %v113, 1
  %v1125 = vrot.slane %v114, 1
  %v1126 = vsel %vm215, %v1124, %v1125
  %v1127 = vrot.slane %v115, 1
  %v1128 = vsel %vm215, %v1125, %v1127
  %1129 = vrot.lane.b32.xlu0 %v223, 16
  %v1130 = vpop.permute.xlu0 %1129
  %1131 = vrot.lane.b32.xlu0 %v225, 16
  %v1132 = vpop.permute.xlu0 %1131
  %1133 = vrot.lane.b32.xlu0 %v228, 16
  %v1134 = vpop.permute.xlu0 %1133
  %1135 = vrot.lane.b32.xlu0 %v230, 16
  %v1136 = vpop.permute.xlu0 %1135
  %1137 = vrot.lane.b32.xlu0 %v233, 16
  %v1138 = vpop.permute.xlu0 %1137
  %1139 = vrot.lane.b32.xlu0 %v235, 16
  %v1140 = vpop.permute.xlu0 %1139
  %1141 = vrot.lane.b32.xlu0 %v238, 16
  %v1142 = vpop.permute.xlu0 %1141
  %1143 = vrot.lane.b32.xlu0 %v240, 16
  %v1144 = vpop.permute.xlu0 %1143
  %1145 = vrot.lane.b32.xlu0 %v243, 16
  %v1146 = vpop.permute.xlu0 %1145
  %1147 = vrot.lane.b32.xlu0 %v245, 16
  %v1148 = vpop.permute.xlu0 %1147
  %1149 = vrot.lane.b32.xlu0 %v248, 16
  %v1150 = vpop.permute.xlu0 %1149
  %1151 = vrot.lane.b32.xlu0 %v250, 16
  %v1152 = vpop.permute.xlu0 %1151
  %1153 = vrot.lane.b32.xlu0 %v253, 16
  %v1154 = vpop.permute.xlu0 %1153
  %1155 = vrot.lane.b32.xlu0 %v255, 16
  %v1156 = vpop.permute.xlu0 %1155
  %1157 = vrot.lane.b32.xlu0 %v258, 16
  %v1158 = vpop.permute.xlu0 %1157
  %1159 = vrot.lane.b32.xlu0 %v260, 16
  %v1160 = vpop.permute.xlu0 %1159
  %1161 = vrot.lane.b32.xlu0 %v263, 16
  %v1162 = vpop.permute.xlu0 %1161
  %1163 = vrot.lane.b32.xlu0 %v265, 16
  %v1164 = vpop.permute.xlu0 %1163
  %1165 = vrot.lane.b32.xlu0 %v268, 16
  %v1166 = vpop.permute.xlu0 %1165
  %1167 = vrot.lane.b32.xlu0 %v270, 16
  %v1168 = vpop.permute.xlu0 %1167
  %1169 = vrot.lane.b32.xlu0 %v273, 16
  %v1170 = vpop.permute.xlu0 %1169
  %1171 = vrot.lane.b32.xlu0 %v275, 16
  %v1172 = vpop.permute.xlu0 %1171
  %1173 = vrot.lane.b32.xlu0 %v278, 16
  %v1174 = vpop.permute.xlu0 %1173
  %1175 = vrot.lane.b32.xlu0 %v280, 16
  %v1176 = vpop.permute.xlu0 %1175
  %1177 = vrot.lane.b32.xlu0 %v283, 16
  %v1178 = vpop.permute.xlu0 %1177
  %1179 = vrot.lane.b32.xlu0 %v285, 16
  %v1180 = vpop.permute.xlu0 %1179
  %1181 = vrot.lane.b32.xlu0 %v288, 16
  %v1182 = vpop.permute.xlu0 %1181
  %1183 = vrot.lane.b32.xlu0 %v290, 16
  %v1184 = vpop.permute.xlu0 %1183
  %1185 = vrot.lane.b32.xlu0 %v293, 16
  %v1186 = vpop.permute.xlu0 %1185
  %1187 = vrot.lane.b32.xlu0 %v295, 16
  %v1188 = vpop.permute.xlu0 %1187
  %1189 = vrot.lane.b32.xlu0 %v1121, 16
  %v1190 = vpop.permute.xlu0 %1189
  %1191 = vrot.lane.b32.xlu0 %v1123, 16
  %v1192 = vpop.permute.xlu0 %1191
  %1193 = vrot.lane.b32.xlu0 %v303, 16
  %v1194 = vpop.permute.xlu0 %1193
  %1195 = vrot.lane.b32.xlu0 %v305, 16
  %v1196 = vpop.permute.xlu0 %1195
  %1197 = vrot.lane.b32.xlu0 %v308, 16
  %v1198 = vpop.permute.xlu0 %1197
  %1199 = vrot.lane.b32.xlu0 %v310, 16
  %v1200 = vpop.permute.xlu0 %1199
  %1201 = vrot.lane.b32.xlu0 %v313, 16
  %v1202 = vpop.permute.xlu0 %1201
  %1203 = vrot.lane.b32.xlu0 %v315, 16
  %v1204 = vpop.permute.xlu0 %1203
  %1205 = vrot.lane.b32.xlu0 %v318, 16
  %v1206 = vpop.permute.xlu0 %1205
  %1207 = vrot.lane.b32.xlu0 %v320, 16
  %v1208 = vpop.permute.xlu0 %1207
  %1209 = vrot.lane.b32.xlu0 %v323, 16
  %v1210 = vpop.permute.xlu0 %1209
  %1211 = vrot.lane.b32.xlu0 %v325, 16
  %v1212 = vpop.permute.xlu0 %1211
  %1213 = vrot.lane.b32.xlu0 %v328, 16
  %v1214 = vpop.permute.xlu0 %1213
  %1215 = vrot.lane.b32.xlu0 %v330, 16
  %v1216 = vpop.permute.xlu0 %1215
  %1217 = vrot.lane.b32.xlu0 %v333, 16
  %v1218 = vpop.permute.xlu0 %1217
  %1219 = vrot.lane.b32.xlu0 %v335, 16
  %v1220 = vpop.permute.xlu0 %1219
  %1221 = vrot.lane.b32.xlu0 %v338, 16
  %v1222 = vpop.permute.xlu0 %1221
  %1223 = vrot.lane.b32.xlu0 %v340, 16
  %v1224 = vpop.permute.xlu0 %1223
  %1225 = vrot.lane.b32.xlu0 %v343, 16
  %v1226 = vpop.permute.xlu0 %1225
  %1227 = vrot.lane.b32.xlu0 %v345, 16
  %v1228 = vpop.permute.xlu0 %1227
  %1229 = vrot.lane.b32.xlu0 %v348, 16
  %v1230 = vpop.permute.xlu0 %1229
  %1231 = vrot.lane.b32.xlu0 %v350, 16
  %v1232 = vpop.permute.xlu0 %1231
  %1233 = vrot.lane.b32.xlu0 %v353, 16
  %v1234 = vpop.permute.xlu0 %1233
  %1235 = vrot.lane.b32.xlu0 %v355, 16
  %v1236 = vpop.permute.xlu0 %1235
  %1237 = vrot.lane.b32.xlu0 %v358, 16
  %v1238 = vpop.permute.xlu0 %1237
  %1239 = vrot.lane.b32.xlu0 %v360, 16
  %v1240 = vpop.permute.xlu0 %1239
  %1241 = vrot.lane.b32.xlu0 %v363, 16
  %v1242 = vpop.permute.xlu0 %1241
  %1243 = vrot.lane.b32.xlu0 %v365, 16
  %v1244 = vpop.permute.xlu0 %1243
  %1245 = vrot.lane.b32.xlu0 %v368, 16
  %v1246 = vpop.permute.xlu0 %1245
  %1247 = vrot.lane.b32.xlu0 %v370, 16
  %v1248 = vpop.permute.xlu0 %1247
  %1249 = vrot.lane.b32.xlu0 %v373, 16
  %v1250 = vpop.permute.xlu0 %1249
  %1251 = vrot.lane.b32.xlu0 %v375, 16
  %v1252 = vpop.permute.xlu0 %1251
  %1253 = vrot.lane.b32.xlu0 %v1126, 16
  %v1254 = vpop.permute.xlu0 %1253
  %1255 = vrot.lane.b32.xlu0 %v1128, 16
  %v1256 = vpop.permute.xlu0 %1255
  %v1321 = vrot.slane %v59, 2
  %v1322 = vrot.slane %v60, 2
  %v1323 = vsel %vm568, %v1321, %v1322
  %v1324 = vrot.slane %v61, 2
  %v1325 = vsel %vm568, %v1322, %v1324
  %v1326 = vrot.slane %v113, 2
  %v1327 = vrot.slane %v114, 2
  %v1328 = vsel %vm568, %v1326, %v1327
  %v1329 = vrot.slane %v115, 2
  %v1330 = vsel %vm568, %v1327, %v1329
  %1331 = vrot.lane.b32.xlu0 %v576, 20
  %v1332 = vpop.permute.xlu0 %1331
  %1333 = vrot.lane.b32.xlu0 %v578, 20
  %v1334 = vpop.permute.xlu0 %1333
  %1335 = vrot.lane.b32.xlu0 %v581, 20
  %v1336 = vpop.permute.xlu0 %1335
  %1337 = vrot.lane.b32.xlu0 %v583, 20
  %v1338 = vpop.permute.xlu0 %1337
  %1339 = vrot.lane.b32.xlu0 %v586, 20
  %v1340 = vpop.permute.xlu0 %1339
  %1341 = vrot.lane.b32.xlu0 %v588, 20
  %v1342 = vpop.permute.xlu0 %1341
  %1343 = vrot.lane.b32.xlu0 %v591, 20
  %v1344 = vpop.permute.xlu0 %1343
  %1345 = vrot.lane.b32.xlu0 %v593, 20
  %v1346 = vpop.permute.xlu0 %1345
  %1347 = vrot.lane.b32.xlu0 %v596, 20
  %v1348 = vpop.permute.xlu0 %1347
  %1349 = vrot.lane.b32.xlu0 %v598, 20
  %v1350 = vpop.permute.xlu0 %1349
  %1351 = vrot.lane.b32.xlu0 %v601, 20
  %v1352 = vpop.permute.xlu0 %1351
  %1353 = vrot.lane.b32.xlu0 %v603, 20
  %v1354 = vpop.permute.xlu0 %1353
  %1355 = vrot.lane.b32.xlu0 %v606, 20
  %v1356 = vpop.permute.xlu0 %1355
  %1357 = vrot.lane.b32.xlu0 %v608, 20
  %v1358 = vpop.permute.xlu0 %1357
  %1359 = vrot.lane.b32.xlu0 %v611, 20
  %v1360 = vpop.permute.xlu0 %1359
  %1361 = vrot.lane.b32.xlu0 %v613, 20
  %v1362 = vpop.permute.xlu0 %1361
  %1363 = vrot.lane.b32.xlu0 %v616, 20
  %v1364 = vpop.permute.xlu0 %1363
  %1365 = vrot.lane.b32.xlu0 %v618, 20
  %v1366 = vpop.permute.xlu0 %1365
  %1367 = vrot.lane.b32.xlu0 %v621, 20
  %v1368 = vpop.permute.xlu0 %1367
  %1369 = vrot.lane.b32.xlu0 %v623, 20
  %v1370 = vpop.permute.xlu0 %1369
  %1371 = vrot.lane.b32.xlu0 %v626, 20
  %v1372 = vpop.permute.xlu0 %1371
  %1373 = vrot.lane.b32.xlu0 %v628, 20
  %v1374 = vpop.permute.xlu0 %1373
  %1375 = vrot.lane.b32.xlu0 %v631, 20
  %v1376 = vpop.permute.xlu0 %1375
  %1377 = vrot.lane.b32.xlu0 %v633, 20
  %v1378 = vpop.permute.xlu0 %1377
  %1379 = vrot.lane.b32.xlu0 %v636, 20
  %v1380 = vpop.permute.xlu0 %1379
  %1381 = vrot.lane.b32.xlu0 %v638, 20
  %v1382 = vpop.permute.xlu0 %1381
  %1383 = vrot.lane.b32.xlu0 %v641, 20
  %v1384 = vpop.permute.xlu0 %1383
  %1385 = vrot.lane.b32.xlu0 %v643, 20
  %v1386 = vpop.permute.xlu0 %1385
  %1387 = vrot.lane.b32.xlu0 %v646, 20
  %v1388 = vpop.permute.xlu0 %1387
  %1389 = vrot.lane.b32.xlu0 %v648, 20
  %v1390 = vpop.permute.xlu0 %1389
  %1391 = vrot.lane.b32.xlu0 %v1323, 20
  %v1392 = vpop.permute.xlu0 %1391
  %1393 = vrot.lane.b32.xlu0 %v1325, 20
  %v1394 = vpop.permute.xlu0 %1393
  %1395 = vrot.lane.b32.xlu0 %v656, 20
  %v1396 = vpop.permute.xlu0 %1395
  %1397 = vrot.lane.b32.xlu0 %v658, 20
  %v1398 = vpop.permute.xlu0 %1397
  %1399 = vrot.lane.b32.xlu0 %v661, 20
  %v1400 = vpop.permute.xlu0 %1399
  %1401 = vrot.lane.b32.xlu0 %v663, 20
  %v1402 = vpop.permute.xlu0 %1401
  %1403 = vrot.lane.b32.xlu0 %v666, 20
  %v1404 = vpop.permute.xlu0 %1403
  %1405 = vrot.lane.b32.xlu0 %v668, 20
  %v1406 = vpop.permute.xlu0 %1405
  %1407 = vrot.lane.b32.xlu0 %v671, 20
  %v1408 = vpop.permute.xlu0 %1407
  %1409 = vrot.lane.b32.xlu0 %v673, 20
  %v1410 = vpop.permute.xlu0 %1409
  %1411 = vrot.lane.b32.xlu0 %v676, 20
  %v1412 = vpop.permute.xlu0 %1411
  %1413 = vrot.lane.b32.xlu0 %v678, 20
  %v1414 = vpop.permute.xlu0 %1413
  %1415 = vrot.lane.b32.xlu0 %v681, 20
  %v1416 = vpop.permute.xlu0 %1415
  %1417 = vrot.lane.b32.xlu0 %v683, 20
  %v1418 = vpop.permute.xlu0 %1417
  %1419 = vrot.lane.b32.xlu0 %v686, 20
  %v1420 = vpop.permute.xlu0 %1419
  %1421 = vrot.lane.b32.xlu0 %v688, 20
  %v1422 = vpop.permute.xlu0 %1421
  %1423 = vrot.lane.b32.xlu0 %v691, 20
  %v1424 = vpop.permute.xlu0 %1423
  %1425 = vrot.lane.b32.xlu0 %v693, 20
  %v1426 = vpop.permute.xlu0 %1425
  %1427 = vrot.lane.b32.xlu0 %v696, 20
  %v1428 = vpop.permute.xlu0 %1427
  %1429 = vrot.lane.b32.xlu0 %v698, 20
  %v1430 = vpop.permute.xlu0 %1429
  %1431 = vrot.lane.b32.xlu0 %v701, 20
  %v1432 = vpop.permute.xlu0 %1431
  %1433 = vrot.lane.b32.xlu0 %v703, 20
  %v1434 = vpop.permute.xlu0 %1433
  %1435 = vrot.lane.b32.xlu0 %v706, 20
  %v1436 = vpop.permute.xlu0 %1435
  %1437 = vrot.lane.b32.xlu0 %v708, 20
  %v1438 = vpop.permute.xlu0 %1437
  %1439 = vrot.lane.b32.xlu0 %v711, 20
  %v1440 = vpop.permute.xlu0 %1439
  %1441 = vrot.lane.b32.xlu0 %v713, 20
  %v1442 = vpop.permute.xlu0 %1441
  %1443 = vrot.lane.b32.xlu0 %v716, 20
  %v1444 = vpop.permute.xlu0 %1443
  %1445 = vrot.lane.b32.xlu0 %v718, 20
  %v1446 = vpop.permute.xlu0 %1445
  %1447 = vrot.lane.b32.xlu0 %v721, 20
  %v1448 = vpop.permute.xlu0 %1447
  %1449 = vrot.lane.b32.xlu0 %v723, 20
  %v1450 = vpop.permute.xlu0 %1449
  %1451 = vrot.lane.b32.xlu0 %v726, 20
  %v1452 = vpop.permute.xlu0 %1451
  %1453 = vrot.lane.b32.xlu0 %v728, 20
  %v1454 = vpop.permute.xlu0 %1453
  %1455 = vrot.lane.b32.xlu0 %v1328, 20
  %v1456 = vpop.permute.xlu0 %1455
  %1457 = vrot.lane.b32.xlu0 %v1330, 20
  %v1458 = vpop.permute.xlu0 %1457
  %1527 = vrot.lane.b32.xlu0 %v17, 24
  %v1528 = vpop.permute.xlu0 %1527
  %1529 = vrot.lane.b32.xlu0 %v18, 24
  %v1530 = vpop.permute.xlu0 %1529
  %1531 = vrot.lane.b32.xlu0 %v20, 24
  %v1532 = vpop.permute.xlu0 %1531
  %1533 = vrot.lane.b32.xlu0 %v21, 24
  %v1534 = vpop.permute.xlu0 %1533
  %1535 = vrot.lane.b32.xlu0 %v23, 24
  %v1536 = vpop.permute.xlu0 %1535
  %1537 = vrot.lane.b32.xlu0 %v24, 24
  %v1538 = vpop.permute.xlu0 %1537
  %1539 = vrot.lane.b32.xlu0 %v26, 24
  %v1540 = vpop.permute.xlu0 %1539
  %1541 = vrot.lane.b32.xlu0 %v27, 24
  %v1542 = vpop.permute.xlu0 %1541
  %1543 = vrot.lane.b32.xlu0 %v29, 24
  %v1544 = vpop.permute.xlu0 %1543
  %1545 = vrot.lane.b32.xlu0 %v30, 24
  %v1546 = vpop.permute.xlu0 %1545
  %1547 = vrot.lane.b32.xlu0 %v32, 24
  %v1548 = vpop.permute.xlu0 %1547
  %1549 = vrot.lane.b32.xlu0 %v33, 24
  %v1550 = vpop.permute.xlu0 %1549
  %1551 = vrot.lane.b32.xlu0 %v35, 24
  %v1552 = vpop.permute.xlu0 %1551
  %1553 = vrot.lane.b32.xlu0 %v36, 24
  %v1554 = vpop.permute.xlu0 %1553
  %1555 = vrot.lane.b32.xlu0 %v38, 24
  %v1556 = vpop.permute.xlu0 %1555
  %1557 = vrot.lane.b32.xlu0 %v39, 24
  %v1558 = vpop.permute.xlu0 %1557
  %1559 = vrot.lane.b32.xlu0 %v41, 24
  %v1560 = vpop.permute.xlu0 %1559
  %1561 = vrot.lane.b32.xlu0 %v42, 24
  %v1562 = vpop.permute.xlu0 %1561
  %1563 = vrot.lane.b32.xlu0 %v44, 24
  %v1564 = vpop.permute.xlu0 %1563
  %1565 = vrot.lane.b32.xlu0 %v45, 24
  %v1566 = vpop.permute.xlu0 %1565
  %1567 = vrot.lane.b32.xlu0 %v47, 24
  %v1568 = vpop.permute.xlu0 %1567
  %1569 = vrot.lane.b32.xlu0 %v48, 24
  %v1570 = vpop.permute.xlu0 %1569
  %1571 = vrot.lane.b32.xlu0 %v50, 24
  %v1572 = vpop.permute.xlu0 %1571
  %1573 = vrot.lane.b32.xlu0 %v51, 24
  %v1574 = vpop.permute.xlu0 %1573
  %1575 = vrot.lane.b32.xlu0 %v53, 24
  %v1576 = vpop.permute.xlu0 %1575
  %1577 = vrot.lane.b32.xlu0 %v54, 24
  %v1578 = vpop.permute.xlu0 %1577
  %1579 = vrot.lane.b32.xlu0 %v56, 24
  %v1580 = vpop.permute.xlu0 %1579
  %1581 = vrot.lane.b32.xlu0 %v57, 24
  %v1582 = vpop.permute.xlu0 %1581
  %1583 = vrot.lane.b32.xlu0 %v59, 24
  %v1584 = vpop.permute.xlu0 %1583
  %1585 = vrot.lane.b32.xlu0 %v60, 24
  %v1586 = vpop.permute.xlu0 %1585
  %1587 = vrot.lane.b32.xlu0 %v62, 24
  %v1588 = vpop.permute.xlu0 %1587
  %1589 = vrot.lane.b32.xlu0 %v63, 24
  %v1590 = vpop.permute.xlu0 %1589
  %1591 = vrot.lane.b32.xlu0 %v71, 24
  %v1592 = vpop.permute.xlu0 %1591
  %1593 = vrot.lane.b32.xlu0 %v72, 24
  %v1594 = vpop.permute.xlu0 %1593
  %1595 = vrot.lane.b32.xlu0 %v74, 24
  %v1596 = vpop.permute.xlu0 %1595
  %1597 = vrot.lane.b32.xlu0 %v75, 24
  %v1598 = vpop.permute.xlu0 %1597
  %1599 = vrot.lane.b32.xlu0 %v77, 24
  %v1600 = vpop.permute.xlu0 %1599
  %1601 = vrot.lane.b32.xlu0 %v78, 24
  %v1602 = vpop.permute.xlu0 %1601
  %1603 = vrot.lane.b32.xlu0 %v80, 24
  %v1604 = vpop.permute.xlu0 %1603
  %1605 = vrot.lane.b32.xlu0 %v81, 24
  %v1606 = vpop.permute.xlu0 %1605
  %1607 = vrot.lane.b32.xlu0 %v83, 24
  %v1608 = vpop.permute.xlu0 %1607
  %1609 = vrot.lane.b32.xlu0 %v84, 24
  %v1610 = vpop.permute.xlu0 %1609
  %1611 = vrot.lane.b32.xlu0 %v86, 24
  %v1612 = vpop.permute.xlu0 %1611
  %1613 = vrot.lane.b32.xlu0 %v87, 24
  %v1614 = vpop.permute.xlu0 %1613
  %1615 = vrot.lane.b32.xlu0 %v89, 24
  %v1616 = vpop.permute.xlu0 %1615
  %1617 = vrot.lane.b32.xlu0 %v90, 24
  %v1618 = vpop.permute.xlu0 %1617
  %1619 = vrot.lane.b32.xlu0 %v92, 24
  %v1620 = vpop.permute.xlu0 %1619
  %1621 = vrot.lane.b32.xlu0 %v93, 24
  %v1622 = vpop.permute.xlu0 %1621
  %1623 = vrot.lane.b32.xlu0 %v95, 24
  %v1624 = vpop.permute.xlu0 %1623
  %1625 = vrot.lane.b32.xlu0 %v96, 24
  %v1626 = vpop.permute.xlu0 %1625
  %1627 = vrot.lane.b32.xlu0 %v98, 24
  %v1628 = vpop.permute.xlu0 %1627
  %1629 = vrot.lane.b32.xlu0 %v99, 24
  %v1630 = vpop.permute.xlu0 %1629
  %1631 = vrot.lane.b32.xlu0 %v101, 24
  %v1632 = vpop.permute.xlu0 %1631
  %1633 = vrot.lane.b32.xlu0 %v102, 24
  %v1634 = vpop.permute.xlu0 %1633
  %1635 = vrot.lane.b32.xlu0 %v104, 24
  %v1636 = vpop.permute.xlu0 %1635
  %1637 = vrot.lane.b32.xlu0 %v105, 24
  %v1638 = vpop.permute.xlu0 %1637
  %1639 = vrot.lane.b32.xlu0 %v107, 24
  %v1640 = vpop.permute.xlu0 %1639
  %1641 = vrot.lane.b32.xlu0 %v108, 24
  %v1642 = vpop.permute.xlu0 %1641
  %1643 = vrot.lane.b32.xlu0 %v110, 24
  %v1644 = vpop.permute.xlu0 %1643
  %1645 = vrot.lane.b32.xlu0 %v111, 24
  %v1646 = vpop.permute.xlu0 %1645
  %1647 = vrot.lane.b32.xlu0 %v113, 24
  %v1648 = vpop.permute.xlu0 %1647
  %1649 = vrot.lane.b32.xlu0 %v114, 24
  %v1650 = vpop.permute.xlu0 %1649
  %1651 = vrot.lane.b32.xlu0 %v116, 24
  %v1652 = vpop.permute.xlu0 %1651
  %1653 = vrot.lane.b32.xlu0 %v117, 24
  %v1654 = vpop.permute.xlu0 %1653
  %v1721 = vrot.slane %v62, 1
  %v1722 = vrot.slane %v63, 1
  %v1723 = vsel %vm215, %v1721, %v1722
  %v1724 = vrot.slane %v64, 1
  %v1725 = vsel %vm215, %v1722, %v1724
  %v1726 = vrot.slane %v116, 1
  %v1727 = vrot.slane %v117, 1
  %v1728 = vsel %vm215, %v1726, %v1727
  %v1729 = vrot.slane %v118, 1
  %v1730 = vsel %vm215, %v1727, %v1729
  %1731 = vrot.lane.b32.xlu0 %v228, 28
  %v1732 = vpop.permute.xlu0 %1731
  %1733 = vrot.lane.b32.xlu0 %v230, 28
  %v1734 = vpop.permute.xlu0 %1733
  %1735 = vrot.lane.b32.xlu0 %v233, 28
  %v1736 = vpop.permute.xlu0 %1735
  %1737 = vrot.lane.b32.xlu0 %v235, 28
  %v1738 = vpop.permute.xlu0 %1737
  %1739 = vrot.lane.b32.xlu0 %v238, 28
  %v1740 = vpop.permute.xlu0 %1739
  %1741 = vrot.lane.b32.xlu0 %v240, 28
  %v1742 = vpop.permute.xlu0 %1741
  %1743 = vrot.lane.b32.xlu0 %v243, 28
  %v1744 = vpop.permute.xlu0 %1743
  %1745 = vrot.lane.b32.xlu0 %v245, 28
  %v1746 = vpop.permute.xlu0 %1745
  %1747 = vrot.lane.b32.xlu0 %v248, 28
  %v1748 = vpop.permute.xlu0 %1747
  %1749 = vrot.lane.b32.xlu0 %v250, 28
  %v1750 = vpop.permute.xlu0 %1749
  %1751 = vrot.lane.b32.xlu0 %v253, 28
  %v1752 = vpop.permute.xlu0 %1751
  %1753 = vrot.lane.b32.xlu0 %v255, 28
  %v1754 = vpop.permute.xlu0 %1753
  %1755 = vrot.lane.b32.xlu0 %v258, 28
  %v1756 = vpop.permute.xlu0 %1755
  %1757 = vrot.lane.b32.xlu0 %v260, 28
  %v1758 = vpop.permute.xlu0 %1757
  %1759 = vrot.lane.b32.xlu0 %v263, 28
  %v1760 = vpop.permute.xlu0 %1759
  %1761 = vrot.lane.b32.xlu0 %v265, 28
  %v1762 = vpop.permute.xlu0 %1761
  %1763 = vrot.lane.b32.xlu0 %v268, 28
  %v1764 = vpop.permute.xlu0 %1763
  %1765 = vrot.lane.b32.xlu0 %v270, 28
  %v1766 = vpop.permute.xlu0 %1765
  %1767 = vrot.lane.b32.xlu0 %v273, 28
  %v1768 = vpop.permute.xlu0 %1767
  %1769 = vrot.lane.b32.xlu0 %v275, 28
  %v1770 = vpop.permute.xlu0 %1769
  %1771 = vrot.lane.b32.xlu0 %v278, 28
  %v1772 = vpop.permute.xlu0 %1771
  %1773 = vrot.lane.b32.xlu0 %v280, 28
  %v1774 = vpop.permute.xlu0 %1773
  %1775 = vrot.lane.b32.xlu0 %v283, 28
  %v1776 = vpop.permute.xlu0 %1775
  %1777 = vrot.lane.b32.xlu0 %v285, 28
  %v1778 = vpop.permute.xlu0 %1777
  %1779 = vrot.lane.b32.xlu0 %v288, 28
  %v1780 = vpop.permute.xlu0 %1779
  %1781 = vrot.lane.b32.xlu0 %v290, 28
  %v1782 = vpop.permute.xlu0 %1781
  %1783 = vrot.lane.b32.xlu0 %v293, 28
  %v1784 = vpop.permute.xlu0 %1783
  %1785 = vrot.lane.b32.xlu0 %v295, 28
  %v1786 = vpop.permute.xlu0 %1785
  %1787 = vrot.lane.b32.xlu0 %v1121, 28
  %v1788 = vpop.permute.xlu0 %1787
  %1789 = vrot.lane.b32.xlu0 %v1123, 28
  %v1790 = vpop.permute.xlu0 %1789
  %1791 = vrot.lane.b32.xlu0 %v1723, 28
  %v1792 = vpop.permute.xlu0 %1791
  %1793 = vrot.lane.b32.xlu0 %v1725, 28
  %v1794 = vpop.permute.xlu0 %1793
  %1795 = vrot.lane.b32.xlu0 %v308, 28
  %v1796 = vpop.permute.xlu0 %1795
  %1797 = vrot.lane.b32.xlu0 %v310, 28
  %v1798 = vpop.permute.xlu0 %1797
  %1799 = vrot.lane.b32.xlu0 %v313, 28
  %v1800 = vpop.permute.xlu0 %1799
  %1801 = vrot.lane.b32.xlu0 %v315, 28
  %v1802 = vpop.permute.xlu0 %1801
  %1803 = vrot.lane.b32.xlu0 %v318, 28
  %v1804 = vpop.permute.xlu0 %1803
  %1805 = vrot.lane.b32.xlu0 %v320, 28
  %v1806 = vpop.permute.xlu0 %1805
  %1807 = vrot.lane.b32.xlu0 %v323, 28
  %v1808 = vpop.permute.xlu0 %1807
  %1809 = vrot.lane.b32.xlu0 %v325, 28
  %v1810 = vpop.permute.xlu0 %1809
  %1811 = vrot.lane.b32.xlu0 %v328, 28
  %v1812 = vpop.permute.xlu0 %1811
  %1813 = vrot.lane.b32.xlu0 %v330, 28
  %v1814 = vpop.permute.xlu0 %1813
  %1815 = vrot.lane.b32.xlu0 %v333, 28
  %v1816 = vpop.permute.xlu0 %1815
  %1817 = vrot.lane.b32.xlu0 %v335, 28
  %v1818 = vpop.permute.xlu0 %1817
  %1819 = vrot.lane.b32.xlu0 %v338, 28
  %v1820 = vpop.permute.xlu0 %1819
  %1821 = vrot.lane.b32.xlu0 %v340, 28
  %v1822 = vpop.permute.xlu0 %1821
  %1823 = vrot.lane.b32.xlu0 %v343, 28
  %v1824 = vpop.permute.xlu0 %1823
  %1825 = vrot.lane.b32.xlu0 %v345, 28
  %v1826 = vpop.permute.xlu0 %1825
  %1827 = vrot.lane.b32.xlu0 %v348, 28
  %v1828 = vpop.permute.xlu0 %1827
  %1829 = vrot.lane.b32.xlu0 %v350, 28
  %v1830 = vpop.permute.xlu0 %1829
  %1831 = vrot.lane.b32.xlu0 %v353, 28
  %v1832 = vpop.permute.xlu0 %1831
  %1833 = vrot.lane.b32.xlu0 %v355, 28
  %v1834 = vpop.permute.xlu0 %1833
  %1835 = vrot.lane.b32.xlu0 %v358, 28
  %v1836 = vpop.permute.xlu0 %1835
  %1837 = vrot.lane.b32.xlu0 %v360, 28
  %v1838 = vpop.permute.xlu0 %1837
  %1839 = vrot.lane.b32.xlu0 %v363, 28
  %v1840 = vpop.permute.xlu0 %1839
  %1841 = vrot.lane.b32.xlu0 %v365, 28
  %v1842 = vpop.permute.xlu0 %1841
  %1843 = vrot.lane.b32.xlu0 %v368, 28
  %v1844 = vpop.permute.xlu0 %1843
  %1845 = vrot.lane.b32.xlu0 %v370, 28
  %v1846 = vpop.permute.xlu0 %1845
  %1847 = vrot.lane.b32.xlu0 %v373, 28
  %v1848 = vpop.permute.xlu0 %1847
  %1849 = vrot.lane.b32.xlu0 %v375, 28
  %v1850 = vpop.permute.xlu0 %1849
  %1851 = vrot.lane.b32.xlu0 %v1126, 28
  %v1852 = vpop.permute.xlu0 %1851
  %1853 = vrot.lane.b32.xlu0 %v1128, 28
  %v1854 = vpop.permute.xlu0 %1853
  %1855 = vrot.lane.b32.xlu0 %v1728, 28
  %v1856 = vpop.permute.xlu0 %1855
  %1857 = vrot.lane.b32.xlu0 %v1730, 28
  %v1858 = vpop.permute.xlu0 %1857
  %v1923 = vrot.slane %v62, 2
  %v1924 = vrot.slane %v63, 2
  %v1925 = vsel %vm568, %v1923, %v1924
  %v1926 = vrot.slane %v64, 2
  %v1927 = vsel %vm568, %v1924, %v1926
  %v1928 = vrot.slane %v116, 2
  %v1929 = vrot.slane %v117, 2
  %v1930 = vsel %vm568, %v1928, %v1929
  %v1931 = vrot.slane %v118, 2
  %v1932 = vsel %vm568, %v1929, %v1931
  %1933 = vrot.lane.b32.xlu0 %v581, 32
  %v1934 = vpop.permute.xlu0 %1933
  %1935 = vrot.lane.b32.xlu0 %v583, 32
  %v1936 = vpop.permute.xlu0 %1935
  %1937 = vrot.lane.b32.xlu0 %v586, 32
  %v1938 = vpop.permute.xlu0 %1937
  %1939 = vrot.lane.b32.xlu0 %v588, 32
  %v1940 = vpop.permute.xlu0 %1939
  %1941 = vrot.lane.b32.xlu0 %v591, 32
  %v1942 = vpop.permute.xlu0 %1941
  %1943 = vrot.lane.b32.xlu0 %v593, 32
  %v1944 = vpop.permute.xlu0 %1943
  %1945 = vrot.lane.b32.xlu0 %v596, 32
  %v1946 = vpop.permute.xlu0 %1945
  %1947 = vrot.lane.b32.xlu0 %v598, 32
  %v1948 = vpop.permute.xlu0 %1947
  %1949 = vrot.lane.b32.xlu0 %v601, 32
  %v1950 = vpop.permute.xlu0 %1949
  %1951 = vrot.lane.b32.xlu0 %v603, 32
  %v1952 = vpop.permute.xlu0 %1951
  %1953 = vrot.lane.b32.xlu0 %v606, 32
  %v1954 = vpop.permute.xlu0 %1953
  %1955 = vrot.lane.b32.xlu0 %v608, 32
  %v1956 = vpop.permute.xlu0 %1955
  %1957 = vrot.lane.b32.xlu0 %v611, 32
  %v1958 = vpop.permute.xlu0 %1957
  %1959 = vrot.lane.b32.xlu0 %v613, 32
  %v1960 = vpop.permute.xlu0 %1959
  %1961 = vrot.lane.b32.xlu0 %v616, 32
  %v1962 = vpop.permute.xlu0 %1961
  %1963 = vrot.lane.b32.xlu0 %v618, 32
  %v1964 = vpop.permute.xlu0 %1963
  %1965 = vrot.lane.b32.xlu0 %v621, 32
  %v1966 = vpop.permute.xlu0 %1965
  %1967 = vrot.lane.b32.xlu0 %v623, 32
  %v1968 = vpop.permute.xlu0 %1967
  %1969 = vrot.lane.b32.xlu0 %v626, 32
  %v1970 = vpop.permute.xlu0 %1969
  %1971 = vrot.lane.b32.xlu0 %v628, 32
  %v1972 = vpop.permute.xlu0 %1971
  %1973 = vrot.lane.b32.xlu0 %v631, 32
  %v1974 = vpop.permute.xlu0 %1973
  %1975 = vrot.lane.b32.xlu0 %v633, 32
  %v1976 = vpop.permute.xlu0 %1975
  %1977 = vrot.lane.b32.xlu0 %v636, 32
  %v1978 = vpop.permute.xlu0 %1977
  %1979 = vrot.lane.b32.xlu0 %v638, 32
  %v1980 = vpop.permute.xlu0 %1979
  %1981 = vrot.lane.b32.xlu0 %v641, 32
  %v1982 = vpop.permute.xlu0 %1981
  %1983 = vrot.lane.b32.xlu0 %v643, 32
  %v1984 = vpop.permute.xlu0 %1983
  %1985 = vrot.lane.b32.xlu0 %v646, 32
  %v1986 = vpop.permute.xlu0 %1985
  %1987 = vrot.lane.b32.xlu0 %v648, 32
  %v1988 = vpop.permute.xlu0 %1987
  %1989 = vrot.lane.b32.xlu0 %v1323, 32
  %v1990 = vpop.permute.xlu0 %1989
  %1991 = vrot.lane.b32.xlu0 %v1325, 32
  %v1992 = vpop.permute.xlu0 %1991
  %1993 = vrot.lane.b32.xlu0 %v1925, 32
  %v1994 = vpop.permute.xlu0 %1993
  %1995 = vrot.lane.b32.xlu0 %v1927, 32
  %v1996 = vpop.permute.xlu0 %1995
  %1997 = vrot.lane.b32.xlu0 %v661, 32
  %v1998 = vpop.permute.xlu0 %1997
  %1999 = vrot.lane.b32.xlu0 %v663, 32
  %v2000 = vpop.permute.xlu0 %1999
  %2001 = vrot.lane.b32.xlu0 %v666, 32
  %v2002 = vpop.permute.xlu0 %2001
  %2003 = vrot.lane.b32.xlu0 %v668, 32
  %v2004 = vpop.permute.xlu0 %2003
  %2005 = vrot.lane.b32.xlu0 %v671, 32
  %v2006 = vpop.permute.xlu0 %2005
  %2007 = vrot.lane.b32.xlu0 %v673, 32
  %v2008 = vpop.permute.xlu0 %2007
  %2009 = vrot.lane.b32.xlu0 %v676, 32
  %v2010 = vpop.permute.xlu0 %2009
  %2011 = vrot.lane.b32.xlu0 %v678, 32
  %v2012 = vpop.permute.xlu0 %2011
  %2013 = vrot.lane.b32.xlu0 %v681, 32
  %v2014 = vpop.permute.xlu0 %2013
  %2015 = vrot.lane.b32.xlu0 %v683, 32
  %v2016 = vpop.permute.xlu0 %2015
  %2017 = vrot.lane.b32.xlu0 %v686, 32
  %v2018 = vpop.permute.xlu0 %2017
  %2019 = vrot.lane.b32.xlu0 %v688, 32
  %v2020 = vpop.permute.xlu0 %2019
  %2021 = vrot.lane.b32.xlu0 %v691, 32
  %v2022 = vpop.permute.xlu0 %2021
  %2023 = vrot.lane.b32.xlu0 %v693, 32
  %v2024 = vpop.permute.xlu0 %2023
  %2025 = vrot.lane.b32.xlu0 %v696, 32
  %v2026 = vpop.permute.xlu0 %2025
  %2027 = vrot.lane.b32.xlu0 %v698, 32
  %v2028 = vpop.permute.xlu0 %2027
  %2029 = vrot.lane.b32.xlu0 %v701, 32
  %v2030 = vpop.permute.xlu0 %2029
  %2031 = vrot.lane.b32.xlu0 %v703, 32
  %v2032 = vpop.permute.xlu0 %2031
  %2033 = vrot.lane.b32.xlu0 %v706, 32
  %v2034 = vpop.permute.xlu0 %2033
  %2035 = vrot.lane.b32.xlu0 %v708, 32
  %v2036 = vpop.permute.xlu0 %2035
  %2037 = vrot.lane.b32.xlu0 %v711, 32
  %v2038 = vpop.permute.xlu0 %2037
  %2039 = vrot.lane.b32.xlu0 %v713, 32
  %v2040 = vpop.permute.xlu0 %2039
  %2041 = vrot.lane.b32.xlu0 %v716, 32
  %v2042 = vpop.permute.xlu0 %2041
  %2043 = vrot.lane.b32.xlu0 %v718, 32
  %v2044 = vpop.permute.xlu0 %2043
  %2045 = vrot.lane.b32.xlu0 %v721, 32
  %v2046 = vpop.permute.xlu0 %2045
  %2047 = vrot.lane.b32.xlu0 %v723, 32
  %v2048 = vpop.permute.xlu0 %2047
  %2049 = vrot.lane.b32.xlu0 %v726, 32
  %v2050 = vpop.permute.xlu0 %2049
  %2051 = vrot.lane.b32.xlu0 %v728, 32
  %v2052 = vpop.permute.xlu0 %2051
  %2053 = vrot.lane.b32.xlu0 %v1328, 32
  %v2054 = vpop.permute.xlu0 %2053
  %2055 = vrot.lane.b32.xlu0 %v1330, 32
  %v2056 = vpop.permute.xlu0 %2055
  %2057 = vrot.lane.b32.xlu0 %v1930, 32
  %v2058 = vpop.permute.xlu0 %2057
  %2059 = vrot.lane.b32.xlu0 %v1932, 32
  %v2060 = vpop.permute.xlu0 %2059
  %vm2125 = vcmask 31744
  %v2126 = vsel %vm2125, %v11, %v377
  %v2127 = vsel %vm2125, %v12, %v379
  %v2128 = vsel %vm2125, %v14, %v381
  %v2129 = vsel %vm2125, %v15, %v383
  %v2130 = vsel %vm2125, %v17, %v385
  %v2131 = vsel %vm2125, %v18, %v387
  %v2132 = vsel %vm2125, %v20, %v389
  %v2133 = vsel %vm2125, %v21, %v391
  %v2134 = vsel %vm2125, %v23, %v393
  %v2135 = vsel %vm2125, %v24, %v395
  %v2136 = vsel %vm2125, %v26, %v397
  %v2137 = vsel %vm2125, %v27, %v399
  %v2138 = vsel %vm2125, %v29, %v401
  %v2139 = vsel %vm2125, %v30, %v403
  %v2140 = vsel %vm2125, %v32, %v405
  %v2141 = vsel %vm2125, %v33, %v407
  %v2142 = vsel %vm2125, %v35, %v409
  %v2143 = vsel %vm2125, %v36, %v411
  %v2144 = vsel %vm2125, %v38, %v413
  %v2145 = vsel %vm2125, %v39, %v415
  %v2146 = vsel %vm2125, %v41, %v417
  %v2147 = vsel %vm2125, %v42, %v419
  %v2148 = vsel %vm2125, %v44, %v421
  %v2149 = vsel %vm2125, %v45, %v423
  %v2150 = vsel %vm2125, %v47, %v425
  %v2151 = vsel %vm2125, %v48, %v427
  %v2152 = vsel %vm2125, %v50, %v429
  %v2153 = vsel %vm2125, %v51, %v431
  %v2154 = vsel %vm2125, %v53, %v433
  %v2155 = vsel %vm2125, %v54, %v435
  %v2156 = vsel %vm2125, %v56, %v437
  %v2157 = vsel %vm2125, %v57, %v439
  %v2158 = vsel %vm2125, %v65, %v441
  %v2159 = vsel %vm2125, %v66, %v443
  %v2160 = vsel %vm2125, %v68, %v445
  %v2161 = vsel %vm2125, %v69, %v447
  %v2162 = vsel %vm2125, %v71, %v449
  %v2163 = vsel %vm2125, %v72, %v451
  %v2164 = vsel %vm2125, %v74, %v453
  %v2165 = vsel %vm2125, %v75, %v455
  %v2166 = vsel %vm2125, %v77, %v457
  %v2167 = vsel %vm2125, %v78, %v459
  %v2168 = vsel %vm2125, %v80, %v461
  %v2169 = vsel %vm2125, %v81, %v463
  %v2170 = vsel %vm2125, %v83, %v465
  %v2171 = vsel %vm2125, %v84, %v467
  %v2172 = vsel %vm2125, %v86, %v469
  %v2173 = vsel %vm2125, %v87, %v471
  %v2174 = vsel %vm2125, %v89, %v473
  %v2175 = vsel %vm2125, %v90, %v475
  %v2176 = vsel %vm2125, %v92, %v477
  %v2177 = vsel %vm2125, %v93, %v479
  %v2178 = vsel %vm2125, %v95, %v481
  %v2179 = vsel %vm2125, %v96, %v483
  %v2180 = vsel %vm2125, %v98, %v485
  %v2181 = vsel %vm2125, %v99, %v487
  %v2182 = vsel %vm2125, %v101, %v489
  %v2183 = vsel %vm2125, %v102, %v491
  %v2184 = vsel %vm2125, %v104, %v493
  %v2185 = vsel %vm2125, %v105, %v495
  %v2186 = vsel %vm2125, %v107, %v497
  %v2187 = vsel %vm2125, %v108, %v499
  %v2188 = vsel %vm2125, %v110, %v501
  %v2189 = vsel %vm2125, %v111, %v503
  %vm2190 = vcmask 64512
  %v2191 = vsel %vm2190, %v2126, %v730
  %v2192 = vsel %vm2190, %v2127, %v732
  %v2193 = vsel %vm2190, %v2128, %v734
  %v2194 = vsel %vm2190, %v2129, %v736
  %v2195 = vsel %vm2190, %v2130, %v738
  %v2196 = vsel %vm2190, %v2131, %v740
  %v2197 = vsel %vm2190, %v2132, %v742
  %v2198 = vsel %vm2190, %v2133, %v744
  %v2199 = vsel %vm2190, %v2134, %v746
  %v2200 = vsel %vm2190, %v2135, %v748
  %v2201 = vsel %vm2190, %v2136, %v750
  %v2202 = vsel %vm2190, %v2137, %v752
  %v2203 = vsel %vm2190, %v2138, %v754
  %v2204 = vsel %vm2190, %v2139, %v756
  %v2205 = vsel %vm2190, %v2140, %v758
  %v2206 = vsel %vm2190, %v2141, %v760
  %v2207 = vsel %vm2190, %v2142, %v762
  %v2208 = vsel %vm2190, %v2143, %v764
  %v2209 = vsel %vm2190, %v2144, %v766
  %v2210 = vsel %vm2190, %v2145, %v768
  %v2211 = vsel %vm2190, %v2146, %v770
  %v2212 = vsel %vm2190, %v2147, %v772
  %v2213 = vsel %vm2190, %v2148, %v774
  %v2214 = vsel %vm2190, %v2149, %v776
  %v2215 = vsel %vm2190, %v2150, %v778
  %v2216 = vsel %vm2190, %v2151, %v780
  %v2217 = vsel %vm2190, %v2152, %v782
  %v2218 = vsel %vm2190, %v2153, %v784
  %v2219 = vsel %vm2190, %v2154, %v786
  %v2220 = vsel %vm2190, %v2155, %v788
  %v2221 = vsel %vm2190, %v2156, %v790
  %v2222 = vsel %vm2190, %v2157, %v792
  %v2223 = vsel %vm2190, %v2158, %v794
  %v2224 = vsel %vm2190, %v2159, %v796
  %v2225 = vsel %vm2190, %v2160, %v798
  %v2226 = vsel %vm2190, %v2161, %v800
  %v2227 = vsel %vm2190, %v2162, %v802
  %v2228 = vsel %vm2190, %v2163, %v804
  %v2229 = vsel %vm2190, %v2164, %v806
  %v2230 = vsel %vm2190, %v2165, %v808
  %v2231 = vsel %vm2190, %v2166, %v810
  %v2232 = vsel %vm2190, %v2167, %v812
  %v2233 = vsel %vm2190, %v2168, %v814
  %v2234 = vsel %vm2190, %v2169, %v816
  %v2235 = vsel %vm2190, %v2170, %v818
  %v2236 = vsel %vm2190, %v2171, %v820
  %v2237 = vsel %vm2190, %v2172, %v822
  %v2238 = vsel %vm2190, %v2173, %v824
  %v2239 = vsel %vm2190, %v2174, %v826
  %v2240 = vsel %vm2190, %v2175, %v828
  %v2241 = vsel %vm2190, %v2176, %v830
  %v2242 = vsel %vm2190, %v2177, %v832
  %v2243 = vsel %vm2190, %v2178, %v834
  %v2244 = vsel %vm2190, %v2179, %v836
  %v2245 = vsel %vm2190, %v2180, %v838
  %v2246 = vsel %vm2190, %v2181, %v840
  %v2247 = vsel %vm2190, %v2182, %v842
  %v2248 = vsel %vm2190, %v2183, %v844
  %v2249 = vsel %vm2190, %v2184, %v846
  %v2250 = vsel %vm2190, %v2185, %v848
  %v2251 = vsel %vm2190, %v2186, %v850
  %v2252 = vsel %vm2190, %v2187, %v852
  %v2253 = vsel %vm2190, %v2188, %v854
  %v2254 = vsel %vm2190, %v2189, %v856
  %vm2255 = vcmask 97280
  %v2256 = vsel %vm2255, %v2191, %v926
  %v2257 = vsel %vm2255, %v2192, %v928
  %v2258 = vsel %vm2255, %v2193, %v930
  %v2259 = vsel %vm2255, %v2194, %v932
  %v2260 = vsel %vm2255, %v2195, %v934
  %v2261 = vsel %vm2255, %v2196, %v936
  %v2262 = vsel %vm2255, %v2197, %v938
  %v2263 = vsel %vm2255, %v2198, %v940
  %v2264 = vsel %vm2255, %v2199, %v942
  %v2265 = vsel %vm2255, %v2200, %v944
  %v2266 = vsel %vm2255, %v2201, %v946
  %v2267 = vsel %vm2255, %v2202, %v948
  %v2268 = vsel %vm2255, %v2203, %v950
  %v2269 = vsel %vm2255, %v2204, %v952
  %v2270 = vsel %vm2255, %v2205, %v954
  %v2271 = vsel %vm2255, %v2206, %v956
  %v2272 = vsel %vm2255, %v2207, %v958
  %v2273 = vsel %vm2255, %v2208, %v960
  %v2274 = vsel %vm2255, %v2209, %v962
  %v2275 = vsel %vm2255, %v2210, %v964
  %v2276 = vsel %vm2255, %v2211, %v966
  %v2277 = vsel %vm2255, %v2212, %v968
  %v2278 = vsel %vm2255, %v2213, %v970
  %v2279 = vsel %vm2255, %v2214, %v972
  %v2280 = vsel %vm2255, %v2215, %v974
  %v2281 = vsel %vm2255, %v2216, %v976
  %v2282 = vsel %vm2255, %v2217, %v978
  %v2283 = vsel %vm2255, %v2218, %v980
  %v2284 = vsel %vm2255, %v2219, %v982
  %v2285 = vsel %vm2255, %v2220, %v984
  %v2286 = vsel %vm2255, %v2221, %v986
  %v2287 = vsel %vm2255, %v2222, %v988
  %v2288 = vsel %vm2255, %v2223, %v990
  %v2289 = vsel %vm2255, %v2224, %v992
  %v2290 = vsel %vm2255, %v2225, %v994
  %v2291 = vsel %vm2255, %v2226, %v996
  %v2292 = vsel %vm2255, %v2227, %v998
  %v2293 = vsel %vm2255, %v2228, %v1000
  %v2294 = vsel %vm2255, %v2229, %v1002
  %v2295 = vsel %vm2255, %v2230, %v1004
  %v2296 = vsel %vm2255, %v2231, %v1006
  %v2297 = vsel %vm2255, %v2232, %v1008
  %v2298 = vsel %vm2255, %v2233, %v1010
  %v2299 = vsel %vm2255, %v2234, %v1012
  %v2300 = vsel %vm2255, %v2235, %v1014
  %v2301 = vsel %vm2255, %v2236, %v1016
  %v2302 = vsel %vm2255, %v2237, %v1018
  %v2303 = vsel %vm2255, %v2238, %v1020
  %v2304 = vsel %vm2255, %v2239, %v1022
  %v2305 = vsel %vm2255, %v2240, %v1024
  %v2306 = vsel %vm2255, %v2241, %v1026
  %v2307 = vsel %vm2255, %v2242, %v1028
  %v2308 = vsel %vm2255, %v2243, %v1030
  %v2309 = vsel %vm2255, %v2244, %v1032
  %v2310 = vsel %vm2255, %v2245, %v1034
  %v2311 = vsel %vm2255, %v2246, %v1036
  %v2312 = vsel %vm2255, %v2247, %v1038
  %v2313 = vsel %vm2255, %v2248, %v1040
  %v2314 = vsel %vm2255, %v2249, %v1042
  %v2315 = vsel %vm2255, %v2250, %v1044
  %v2316 = vsel %vm2255, %v2251, %v1046
  %v2317 = vsel %vm2255, %v2252, %v1048
  %v2318 = vsel %vm2255, %v2253, %v1050
  %v2319 = vsel %vm2255, %v2254, %v1052
  %vm2320 = vcmask 130048
  %v2321 = vsel %vm2320, %v2256, %v1130
  %v2322 = vsel %vm2320, %v2257, %v1132
  %v2323 = vsel %vm2320, %v2258, %v1134
  %v2324 = vsel %vm2320, %v2259, %v1136
  %v2325 = vsel %vm2320, %v2260, %v1138
  %v2326 = vsel %vm2320, %v2261, %v1140
  %v2327 = vsel %vm2320, %v2262, %v1142
  %v2328 = vsel %vm2320, %v2263, %v1144
  %v2329 = vsel %vm2320, %v2264, %v1146
  %v2330 = vsel %vm2320, %v2265, %v1148
  %v2331 = vsel %vm2320, %v2266, %v1150
  %v2332 = vsel %vm2320, %v2267, %v1152
  %v2333 = vsel %vm2320, %v2268, %v1154
  %v2334 = vsel %vm2320, %v2269, %v1156
  %v2335 = vsel %vm2320, %v2270, %v1158
  %v2336 = vsel %vm2320, %v2271, %v1160
  %v2337 = vsel %vm2320, %v2272, %v1162
  %v2338 = vsel %vm2320, %v2273, %v1164
  %v2339 = vsel %vm2320, %v2274, %v1166
  %v2340 = vsel %vm2320, %v2275, %v1168
  %v2341 = vsel %vm2320, %v2276, %v1170
  %v2342 = vsel %vm2320, %v2277, %v1172
  %v2343 = vsel %vm2320, %v2278, %v1174
  %v2344 = vsel %vm2320, %v2279, %v1176
  %v2345 = vsel %vm2320, %v2280, %v1178
  %v2346 = vsel %vm2320, %v2281, %v1180
  %v2347 = vsel %vm2320, %v2282, %v1182
  %v2348 = vsel %vm2320, %v2283, %v1184
  %v2349 = vsel %vm2320, %v2284, %v1186
  %v2350 = vsel %vm2320, %v2285, %v1188
  %v2351 = vsel %vm2320, %v2286, %v1190
  %v2352 = vsel %vm2320, %v2287, %v1192
  %v2353 = vsel %vm2320, %v2288, %v1194
  %v2354 = vsel %vm2320, %v2289, %v1196
  %v2355 = vsel %vm2320, %v2290, %v1198
  %v2356 = vsel %vm2320, %v2291, %v1200
  %v2357 = vsel %vm2320, %v2292, %v1202
  %v2358 = vsel %vm2320, %v2293, %v1204
  %v2359 = vsel %vm2320, %v2294, %v1206
  %v2360 = vsel %vm2320, %v2295, %v1208
  %v2361 = vsel %vm2320, %v2296, %v1210
  %v2362 = vsel %vm2320, %v2297, %v1212
  %v2363 = vsel %vm2320, %v2298, %v1214
  %v2364 = vsel %vm2320, %v2299, %v1216
  %v2365 = vsel %vm2320, %v2300, %v1218
  %v2366 = vsel %vm2320, %v2301, %v1220
  %v2367 = vsel %vm2320, %v2302, %v1222
  %v2368 = vsel %vm2320, %v2303, %v1224
  %v2369 = vsel %vm2320, %v2304, %v1226
  %v2370 = vsel %vm2320, %v2305, %v1228
  %v2371 = vsel %vm2320, %v2306, %v1230
  %v2372 = vsel %vm2320, %v2307, %v1232
  %v2373 = vsel %vm2320, %v2308, %v1234
  %v2374 = vsel %vm2320, %v2309, %v1236
  %v2375 = vsel %vm2320, %v2310, %v1238
  %v2376 = vsel %vm2320, %v2311, %v1240
  %v2377 = vsel %vm2320, %v2312, %v1242
  %v2378 = vsel %vm2320, %v2313, %v1244
  %v2379 = vsel %vm2320, %v2314, %v1246
  %v2380 = vsel %vm2320, %v2315, %v1248
  %v2381 = vsel %vm2320, %v2316, %v1250
  %v2382 = vsel %vm2320, %v2317, %v1252
  %v2383 = vsel %vm2320, %v2318, %v1254
  %v2384 = vsel %vm2320, %v2319, %v1256
  %vm2385 = vcmask 162816
  %v2386 = vsel %vm2385, %v2321, %v1332
  %v2387 = vsel %vm2385, %v2322, %v1334
  %v2388 = vsel %vm2385, %v2323, %v1336
  %v2389 = vsel %vm2385, %v2324, %v1338
  %v2390 = vsel %vm2385, %v2325, %v1340
  %v2391 = vsel %vm2385, %v2326, %v1342
  %v2392 = vsel %vm2385, %v2327, %v1344
  %v2393 = vsel %vm2385, %v2328, %v1346
  %v2394 = vsel %vm2385, %v2329, %v1348
  %v2395 = vsel %vm2385, %v2330, %v1350
  %v2396 = vsel %vm2385, %v2331, %v1352
  %v2397 = vsel %vm2385, %v2332, %v1354
  %v2398 = vsel %vm2385, %v2333, %v1356
  %v2399 = vsel %vm2385, %v2334, %v1358
  %v2400 = vsel %vm2385, %v2335, %v1360
  %v2401 = vsel %vm2385, %v2336, %v1362
  %v2402 = vsel %vm2385, %v2337, %v1364
  %v2403 = vsel %vm2385, %v2338, %v1366
  %v2404 = vsel %vm2385, %v2339, %v1368
  %v2405 = vsel %vm2385, %v2340, %v1370
  %v2406 = vsel %vm2385, %v2341, %v1372
  %v2407 = vsel %vm2385, %v2342, %v1374
  %v2408 = vsel %vm2385, %v2343, %v1376
  %v2409 = vsel %vm2385, %v2344, %v1378
  %v2410 = vsel %vm2385, %v2345, %v1380
  %v2411 = vsel %vm2385, %v2346, %v1382
  %v2412 = vsel %vm2385, %v2347, %v1384
  %v2413 = vsel %vm2385, %v2348, %v1386
  %v2414 = vsel %vm2385, %v2349, %v1388
  %v2415 = vsel %vm2385, %v2350, %v1390
  %v2416 = vsel %vm2385, %v2351, %v1392
  %v2417 = vsel %vm2385, %v2352, %v1394
  %v2418 = vsel %vm2385, %v2353, %v1396
  %v2419 = vsel %vm2385, %v2354, %v1398
  %v2420 = vsel %vm2385, %v2355, %v1400
  %v2421 = vsel %vm2385, %v2356, %v1402
  %v2422 = vsel %vm2385, %v2357, %v1404
  %v2423 = vsel %vm2385, %v2358, %v1406
  %v2424 = vsel %vm2385, %v2359, %v1408
  %v2425 = vsel %vm2385, %v2360, %v1410
  %v2426 = vsel %vm2385, %v2361, %v1412
  %v2427 = vsel %vm2385, %v2362, %v1414
  %v2428 = vsel %vm2385, %v2363, %v1416
  %v2429 = vsel %vm2385, %v2364, %v1418
  %v2430 = vsel %vm2385, %v2365, %v1420
  %v2431 = vsel %vm2385, %v2366, %v1422
  %v2432 = vsel %vm2385, %v2367, %v1424
  %v2433 = vsel %vm2385, %v2368, %v1426
  %v2434 = vsel %vm2385, %v2369, %v1428
  %v2435 = vsel %vm2385, %v2370, %v1430
  %v2436 = vsel %vm2385, %v2371, %v1432
  %v2437 = vsel %vm2385, %v2372, %v1434
  %v2438 = vsel %vm2385, %v2373, %v1436
  %v2439 = vsel %vm2385, %v2374, %v1438
  %v2440 = vsel %vm2385, %v2375, %v1440
  %v2441 = vsel %vm2385, %v2376, %v1442
  %v2442 = vsel %vm2385, %v2377, %v1444
  %v2443 = vsel %vm2385, %v2378, %v1446
  %v2444 = vsel %vm2385, %v2379, %v1448
  %v2445 = vsel %vm2385, %v2380, %v1450
  %v2446 = vsel %vm2385, %v2381, %v1452
  %v2447 = vsel %vm2385, %v2382, %v1454
  %v2448 = vsel %vm2385, %v2383, %v1456
  %v2449 = vsel %vm2385, %v2384, %v1458
  %vm2450 = vcmask 195584
  %v2451 = vsel %vm2450, %v2386, %v1528
  %v2452 = vsel %vm2450, %v2387, %v1530
  %v2453 = vsel %vm2450, %v2388, %v1532
  %v2454 = vsel %vm2450, %v2389, %v1534
  %v2455 = vsel %vm2450, %v2390, %v1536
  %v2456 = vsel %vm2450, %v2391, %v1538
  %v2457 = vsel %vm2450, %v2392, %v1540
  %v2458 = vsel %vm2450, %v2393, %v1542
  %v2459 = vsel %vm2450, %v2394, %v1544
  %v2460 = vsel %vm2450, %v2395, %v1546
  %v2461 = vsel %vm2450, %v2396, %v1548
  %v2462 = vsel %vm2450, %v2397, %v1550
  %v2463 = vsel %vm2450, %v2398, %v1552
  %v2464 = vsel %vm2450, %v2399, %v1554
  %v2465 = vsel %vm2450, %v2400, %v1556
  %v2466 = vsel %vm2450, %v2401, %v1558
  %v2467 = vsel %vm2450, %v2402, %v1560
  %v2468 = vsel %vm2450, %v2403, %v1562
  %v2469 = vsel %vm2450, %v2404, %v1564
  %v2470 = vsel %vm2450, %v2405, %v1566
  %v2471 = vsel %vm2450, %v2406, %v1568
  %v2472 = vsel %vm2450, %v2407, %v1570
  %v2473 = vsel %vm2450, %v2408, %v1572
  %v2474 = vsel %vm2450, %v2409, %v1574
  %v2475 = vsel %vm2450, %v2410, %v1576
  %v2476 = vsel %vm2450, %v2411, %v1578
  %v2477 = vsel %vm2450, %v2412, %v1580
  %v2478 = vsel %vm2450, %v2413, %v1582
  %v2479 = vsel %vm2450, %v2414, %v1584
  %v2480 = vsel %vm2450, %v2415, %v1586
  %v2481 = vsel %vm2450, %v2416, %v1588
  %v2482 = vsel %vm2450, %v2417, %v1590
  %v2483 = vsel %vm2450, %v2418, %v1592
  %v2484 = vsel %vm2450, %v2419, %v1594
  %v2485 = vsel %vm2450, %v2420, %v1596
  %v2486 = vsel %vm2450, %v2421, %v1598
  %v2487 = vsel %vm2450, %v2422, %v1600
  %v2488 = vsel %vm2450, %v2423, %v1602
  %v2489 = vsel %vm2450, %v2424, %v1604
  %v2490 = vsel %vm2450, %v2425, %v1606
  %v2491 = vsel %vm2450, %v2426, %v1608
  %v2492 = vsel %vm2450, %v2427, %v1610
  %v2493 = vsel %vm2450, %v2428, %v1612
  %v2494 = vsel %vm2450, %v2429, %v1614
  %v2495 = vsel %vm2450, %v2430, %v1616
  %v2496 = vsel %vm2450, %v2431, %v1618
  %v2497 = vsel %vm2450, %v2432, %v1620
  %v2498 = vsel %vm2450, %v2433, %v1622
  %v2499 = vsel %vm2450, %v2434, %v1624
  %v2500 = vsel %vm2450, %v2435, %v1626
  %v2501 = vsel %vm2450, %v2436, %v1628
  %v2502 = vsel %vm2450, %v2437, %v1630
  %v2503 = vsel %vm2450, %v2438, %v1632
  %v2504 = vsel %vm2450, %v2439, %v1634
  %v2505 = vsel %vm2450, %v2440, %v1636
  %v2506 = vsel %vm2450, %v2441, %v1638
  %v2507 = vsel %vm2450, %v2442, %v1640
  %v2508 = vsel %vm2450, %v2443, %v1642
  %v2509 = vsel %vm2450, %v2444, %v1644
  %v2510 = vsel %vm2450, %v2445, %v1646
  %v2511 = vsel %vm2450, %v2446, %v1648
  %v2512 = vsel %vm2450, %v2447, %v1650
  %v2513 = vsel %vm2450, %v2448, %v1652
  %v2514 = vsel %vm2450, %v2449, %v1654
  %vm2515 = vcmask 228352
  %v2516 = vsel %vm2515, %v2451, %v1732
  %v2517 = vsel %vm2515, %v2452, %v1734
  %v2518 = vsel %vm2515, %v2453, %v1736
  %v2519 = vsel %vm2515, %v2454, %v1738
  %v2520 = vsel %vm2515, %v2455, %v1740
  %v2521 = vsel %vm2515, %v2456, %v1742
  %v2522 = vsel %vm2515, %v2457, %v1744
  %v2523 = vsel %vm2515, %v2458, %v1746
  %v2524 = vsel %vm2515, %v2459, %v1748
  %v2525 = vsel %vm2515, %v2460, %v1750
  %v2526 = vsel %vm2515, %v2461, %v1752
  %v2527 = vsel %vm2515, %v2462, %v1754
  %v2528 = vsel %vm2515, %v2463, %v1756
  %v2529 = vsel %vm2515, %v2464, %v1758
  %v2530 = vsel %vm2515, %v2465, %v1760
  %v2531 = vsel %vm2515, %v2466, %v1762
  %v2532 = vsel %vm2515, %v2467, %v1764
  %v2533 = vsel %vm2515, %v2468, %v1766
  %v2534 = vsel %vm2515, %v2469, %v1768
  %v2535 = vsel %vm2515, %v2470, %v1770
  %v2536 = vsel %vm2515, %v2471, %v1772
  %v2537 = vsel %vm2515, %v2472, %v1774
  %v2538 = vsel %vm2515, %v2473, %v1776
  %v2539 = vsel %vm2515, %v2474, %v1778
  %v2540 = vsel %vm2515, %v2475, %v1780
  %v2541 = vsel %vm2515, %v2476, %v1782
  %v2542 = vsel %vm2515, %v2477, %v1784
  %v2543 = vsel %vm2515, %v2478, %v1786
  %v2544 = vsel %vm2515, %v2479, %v1788
  %v2545 = vsel %vm2515, %v2480, %v1790
  %v2546 = vsel %vm2515, %v2481, %v1792
  %v2547 = vsel %vm2515, %v2482, %v1794
  %v2548 = vsel %vm2515, %v2483, %v1796
  %v2549 = vsel %vm2515, %v2484, %v1798
  %v2550 = vsel %vm2515, %v2485, %v1800
  %v2551 = vsel %vm2515, %v2486, %v1802
  %v2552 = vsel %vm2515, %v2487, %v1804
  %v2553 = vsel %vm2515, %v2488, %v1806
  %v2554 = vsel %vm2515, %v2489, %v1808
  %v2555 = vsel %vm2515, %v2490, %v1810
  %v2556 = vsel %vm2515, %v2491, %v1812
  %v2557 = vsel %vm2515, %v2492, %v1814
  %v2558 = vsel %vm2515, %v2493, %v1816
  %v2559 = vsel %vm2515, %v2494, %v1818
  %v2560 = vsel %vm2515, %v2495, %v1820
  %v2561 = vsel %vm2515, %v2496, %v1822
  %v2562 = vsel %vm2515, %v2497, %v1824
  %v2563 = vsel %vm2515, %v2498, %v1826
  %v2564 = vsel %vm2515, %v2499, %v1828
  %v2565 = vsel %vm2515, %v2500, %v1830
  %v2566 = vsel %vm2515, %v2501, %v1832
  %v2567 = vsel %vm2515, %v2502, %v1834
  %v2568 = vsel %vm2515, %v2503, %v1836
  %v2569 = vsel %vm2515, %v2504, %v1838
  %v2570 = vsel %vm2515, %v2505, %v1840
  %v2571 = vsel %vm2515, %v2506, %v1842
  %v2572 = vsel %vm2515, %v2507, %v1844
  %v2573 = vsel %vm2515, %v2508, %v1846
  %v2574 = vsel %vm2515, %v2509, %v1848
  %v2575 = vsel %vm2515, %v2510, %v1850
  %v2576 = vsel %vm2515, %v2511, %v1852
  %v2577 = vsel %vm2515, %v2512, %v1854
  %v2578 = vsel %vm2515, %v2513, %v1856
  %v2579 = vsel %vm2515, %v2514, %v1858
  %vm2580 = vcmask 261120
  %v2581 = vsel %vm2580, %v2516, %v1934
  %v2582 = vsel %vm2580, %v2517, %v1936
  %v2583 = vsel %vm2580, %v2518, %v1938
  %v2584 = vsel %vm2580, %v2519, %v1940
  %v2585 = vsel %vm2580, %v2520, %v1942
  %v2586 = vsel %vm2580, %v2521, %v1944
  %v2587 = vsel %vm2580, %v2522, %v1946
  %v2588 = vsel %vm2580, %v2523, %v1948
  %v2589 = vsel %vm2580, %v2524, %v1950
  %v2590 = vsel %vm2580, %v2525, %v1952
  %v2591 = vsel %vm2580, %v2526, %v1954
  %v2592 = vsel %vm2580, %v2527, %v1956
  %v2593 = vsel %vm2580, %v2528, %v1958
  %v2594 = vsel %vm2580, %v2529, %v1960
  %v2595 = vsel %vm2580, %v2530, %v1962
  %v2596 = vsel %vm2580, %v2531, %v1964
  %v2597 = vsel %vm2580, %v2532, %v1966
  %v2598 = vsel %vm2580, %v2533, %v1968
  %v2599 = vsel %vm2580, %v2534, %v1970
  %v2600 = vsel %vm2580, %v2535, %v1972
  %v2601 = vsel %vm2580, %v2536, %v1974
  %v2602 = vsel %vm2580, %v2537, %v1976
  %v2603 = vsel %vm2580, %v2538, %v1978
  %v2604 = vsel %vm2580, %v2539, %v1980
  %v2605 = vsel %vm2580, %v2540, %v1982
  %v2606 = vsel %vm2580, %v2541, %v1984
  %v2607 = vsel %vm2580, %v2542, %v1986
  %v2608 = vsel %vm2580, %v2543, %v1988
  %v2609 = vsel %vm2580, %v2544, %v1990
  %v2610 = vsel %vm2580, %v2545, %v1992
  %v2611 = vsel %vm2580, %v2546, %v1994
  %v2612 = vsel %vm2580, %v2547, %v1996
  %v2613 = vsel %vm2580, %v2548, %v1998
  %v2614 = vsel %vm2580, %v2549, %v2000
  %v2615 = vsel %vm2580, %v2550, %v2002
  %v2616 = vsel %vm2580, %v2551, %v2004
  %v2617 = vsel %vm2580, %v2552, %v2006
  %v2618 = vsel %vm2580, %v2553, %v2008
  %v2619 = vsel %vm2580, %v2554, %v2010
  %v2620 = vsel %vm2580, %v2555, %v2012
  %v2621 = vsel %vm2580, %v2556, %v2014
  %v2622 = vsel %vm2580, %v2557, %v2016
  %v2623 = vsel %vm2580, %v2558, %v2018
  %v2624 = vsel %vm2580, %v2559, %v2020
  %v2625 = vsel %vm2580, %v2560, %v2022
  %v2626 = vsel %vm2580, %v2561, %v2024
  %v2627 = vsel %vm2580, %v2562, %v2026
  %v2628 = vsel %vm2580, %v2563, %v2028
  %v2629 = vsel %vm2580, %v2564, %v2030
  %v2630 = vsel %vm2580, %v2565, %v2032
  %v2631 = vsel %vm2580, %v2566, %v2034
  %v2632 = vsel %vm2580, %v2567, %v2036
  %v2633 = vsel %vm2580, %v2568, %v2038
  %v2634 = vsel %vm2580, %v2569, %v2040
  %v2635 = vsel %vm2580, %v2570, %v2042
  %v2636 = vsel %vm2580, %v2571, %v2044
  %v2637 = vsel %vm2580, %v2572, %v2046
  %v2638 = vsel %vm2580, %v2573, %v2048
  %v2639 = vsel %vm2580, %v2574, %v2050
  %v2640 = vsel %vm2580, %v2575, %v2052
  %v2641 = vsel %vm2580, %v2576, %v2054
  %v2642 = vsel %vm2580, %v2577, %v2056
  %v2643 = vsel %vm2580, %v2578, %v2058
  %v2644 = vsel %vm2580, %v2579, %v2060
  %v2645 = vld [vmem:[%s1] sm:$0xff]
  %v2646 = vld [vmem:[%s1 + $0x8] sm:$0xff]
  %v2647 = vld [vmem:[%s1 + $0x10] sm:$0xff]
  %v2648 = vld [vmem:[%s1 + $0x18] sm:$0xff]
  %v2649 = vld [vmem:[%s1 + $0x20] sm:$0xf]
  %vm2650 = vcmask 293888
  %v2652 = vsel %vm2650, %v2581, 0
  %v2655 = vsel %vm2650, %v2582, 0
  %v2658 = vsel %vm2650, %v2583, 0
  %v2661 = vsel %vm2650, %v2584, 0
  %v2664 = vsel %vm2650, %v2585, 0
  %v2667 = vsel %vm2650, %v2586, 0
  %v2670 = vsel %vm2650, %v2587, 0
  %v2673 = vsel %vm2650, %v2588, 0
  %v2676 = vsel %vm2650, %v2589, 0
  %v2679 = vsel %vm2650, %v2590, 0
  %v2682 = vsel %vm2650, %v2591, 0
  %v2685 = vsel %vm2650, %v2592, 0
  %v2688 = vsel %vm2650, %v2593, 0
  %v2691 = vsel %vm2650, %v2594, 0
  %v2694 = vsel %vm2650, %v2595, 0
  %v2697 = vsel %vm2650, %v2596, 0
  %v2700 = vsel %vm2650, %v2597, 0
  %v2703 = vsel %vm2650, %v2598, 0
  %v2706 = vsel %vm2650, %v2599, 0
  %v2709 = vsel %vm2650, %v2600, 0
  %v2712 = vsel %vm2650, %v2601, 0
  %v2715 = vsel %vm2650, %v2602, 0
  %v2718 = vsel %vm2650, %v2603, 0
  %v2721 = vsel %vm2650, %v2604, 0
  %v2724 = vsel %vm2650, %v2605, 0
  %v2727 = vsel %vm2650, %v2606, 0
  %v2730 = vsel %vm2650, %v2607, 0
  %v2733 = vsel %vm2650, %v2608, 0
  %v2736 = vsel %vm2650, %v2609, 0
  %v2739 = vsel %vm2650, %v2610, 0
  %v2742 = vsel %vm2650, %v2611, 0
  %v2745 = vsel %vm2650, %v2612, 0
  %v2748 = vsel %vm2650, %v2613, 0
  %v2751 = vsel %vm2650, %v2614, 0
  %v2754 = vsel %vm2650, %v2615, 0
  %v2757 = vsel %vm2650, %v2616, 0
  %v2760 = vsel %vm2650, %v2617, 0
  %v2763 = vsel %vm2650, %v2618, 0
  %v2766 = vsel %vm2650, %v2619, 0
  %v2769 = vsel %vm2650, %v2620, 0
  %v2772 = vsel %vm2650, %v2621, 0
  %v2775 = vsel %vm2650, %v2622, 0
  %v2778 = vsel %vm2650, %v2623, 0
  %v2781 = vsel %vm2650, %v2624, 0
  %v2784 = vsel %vm2650, %v2625, 0
  %v2787 = vsel %vm2650, %v2626, 0
  %v2790 = vsel %vm2650, %v2627, 0
  %v2793 = vsel %vm2650, %v2628, 0
  %v2796 = vsel %vm2650, %v2629, 0
  %v2799 = vsel %vm2650, %v2630, 0
  %v2802 = vsel %vm2650, %v2631, 0
  %v2805 = vsel %vm2650, %v2632, 0
  %v2808 = vsel %vm2650, %v2633, 0
  %v2811 = vsel %vm2650, %v2634, 0
  %v2814 = vsel %vm2650, %v2635, 0
  %v2817 = vsel %vm2650, %v2636, 0
  %v2820 = vsel %vm2650, %v2637, 0
  %v2823 = vsel %vm2650, %v2638, 0
  %v2826 = vsel %vm2650, %v2639, 0
  %v2829 = vsel %vm2650, %v2640, 0
  %v2832 = vsel %vm2650, %v2641, 0
  %v2835 = vsel %vm2650, %v2642, 0
  %v2838 = vsel %vm2650, %v2643, 0
  %v2841 = vsel %vm2650, %v2644, 0
  %vm2843 = vcmask 1043456
  %v2845 = vsel %vm2843, %v2649, 0
  %2847 = vmatprep.subr.mxu0 0.0
  %2848 = vmatpush1.msra.mxu0 %v2645
  %2849 = vmatprep.subr.mxu0 0.0
  %2850 = vmatpush1.msra.mxu0 %v2646
  %2851 = vmatprep.subr.mxu0 0.0
  %2852 = vmatpush1.msra.mxu0 %v2647
  %2853 = vmatprep.subr.mxu0 0.0
  %2854 = vmatpush1.msra.mxu0 %v2648
  %2855 = vmatprep.subr.mxu0 0.0
  %2856 = vmatpush1.msra.mxu0 %v2845
  %2857 = vmatprep.subr.mxu0 0.0
  %2858 = vmatpush1.msra.mxu0 0.0
  %2859 = vmatprep.subr.mxu0 0.0
  %2860 = vmatpush1.msra.mxu0 0.0
  %2861 = vmatprep.subr.mxu0 0.0
  %2862 = vmatpush1.msra.mxu0 0.0
  %2863 = vmatprep.subr.mxu0 0.0
  %2864 = vmatpush1.msra.mxu0 0.0
  %2865 = vmatprep.subr.mxu0 0.0
  %2866 = vmatpush1.msra.mxu0 0.0
  %2867 = vmatprep.subr.mxu0 0.0
  %2868 = vmatpush1.msra.mxu0 0.0
  %2869 = vmatprep.subr.mxu0 0.0
  %2870 = vmatpush1.msra.mxu0 0.0
  %2871 = vmatprep.subr.mxu0 0.0
  %2872 = vmatpush1.msra.mxu0 0.0
  %2873 = vmatprep.subr.mxu0 0.0
  %2874 = vmatpush1.msra.mxu0 0.0
  %2875 = vmatprep.subr.mxu0 0.0
  %2876 = vmatpush1.msra.mxu0 0.0
  %2877 = vmatprep.subr.mxu0 0.0
  %2878 = vmatpush1.msra.mxu0 0.0
  %2879 = vmatprep.subr.mxu0 0.0
  %2880 = vmatpush1.msra.mxu0 0.0
  %2881 = vmatprep.subr.mxu0 0.0
  %2882 = vmatpush1.msra.mxu0 0.0
  %2883 = vmatprep.subr.mxu0 0.0
  %2884 = vmatpush1.msra.mxu0 0.0
  %2885 = vmatprep.subr.mxu0 0.0
  %2886 = vmatpush1.msra.mxu0 0.0
  %2887 = vmatprep.subr.mxu0 0.0
  %2888 = vmatpush1.msra.mxu0 0.0
  %2889 = vmatprep.subr.mxu0 0.0
  %2890 = vmatpush1.msra.mxu0 0.0
  %2891 = vmatprep.subr.mxu0 0.0
  %2892 = vmatpush1.msra.mxu0 0.0
  %2893 = vmatprep.subr.mxu0 0.0
  %2894 = vmatpush1.msra.mxu0 0.0
  %2895 = vmatprep.subr.mxu0 0.0
  %2896 = vmatpush1.msra.mxu0 0.0
  %2897 = vmatprep.subr.mxu0 0.0
  %2898 = vmatpush1.msra.mxu0 0.0
  %2899 = vmatprep.subr.mxu0 0.0
  %2900 = vmatpush1.msra.mxu0 0.0
  %2901 = vmatprep.subr.mxu0 0.0
  %2902 = vmatpush1.msra.mxu0 0.0
  %2903 = vmatprep.subr.mxu0 0.0
  %2904 = vmatpush1.msra.mxu0 0.0
  %2905 = vmatprep.subr.mxu0 0.0
  %2906 = vmatpush1.msra.mxu0 0.0
  %2907 = vmatprep.subr.mxu0 0.0
  %2908 = vmatpush1.msra.mxu0 0.0
  %2909 = vmatprep.subr.mxu0 0.0
  %2910 = vmatpush1.msra.mxu0 0.0
  %2911 = vmatprep.mubr.f32.mxu0 0.0
  %2912 = vmatmul.mubr.f32.gmra.mrb[0].mxu0 %v2652
  %v2913 = vpop.f32.mrb[0].mxu0
  %v2914 = vadd.f32 0.0, %v2913
  %v2915 = vpop.f32.mrb[0].mxu0
  %2916 = vmatprep.mubr.f32.mxu0 0.0
  %2917 = vmatmul.mubr.f32.gmra.mrb[0].mxu0 %v2655
  %v2918 = vpop.f32.mrb[0].mxu0
  %v2919 = vadd.f32 0.0, %v2918
  %v2920 = vpop.f32.mrb[0].mxu0
  %2921 = vmatprep.mubr.f32.mxu0 0.0
  %2922 = vmatmul.mubr.f32.gmra.mrb[0].mxu0 %v2658
  %v2923 = vpop.f32.mrb[0].mxu0
  %v2924 = vadd.f32 0.0, %v2923
  %v2925 = vpop.f32.mrb[0].mxu0
  %2926 = vmatprep.mubr.f32.mxu0 0.0
  %2927 = vmatmul.mubr.f32.gmra.mrb[0].mxu0 %v2661
  %v2928 = vpop.f32.mrb[0].mxu0
  %v2929 = vadd.f32 0.0, %v2928
  %v2930 = vpop.f32.mrb[0].mxu0
  %2931 = vmatprep.mubr.f32.mxu0 0.0
  %2932 = vmatmul.mubr.f32.gmra.mrb[0].mxu0 %v2664
  %v2933 = vpop.f32.mrb[0].mxu0
  %v2934 = vadd.f32 0.0, %v2933
  %v2935 = vpop.f32.mrb[0].mxu0
  %2936 = vmatprep.mubr.f32.mxu0 0.0
  %2937 = vmatmul.mubr.f32.gmra.mrb[0].mxu0 %v2667
  %v2938 = vpop.f32.mrb[0].mxu0
  %v2939 = vadd.f32 0.0, %v2938
  %v2940 = vpop.f32.mrb[0].mxu0
  %2941 = vmatprep.mubr.f32.mxu0 0.0
  %2942 = vmatmul.mubr.f32.gmra.mrb[0].mxu0 %v2670
  %v2943 = vpop.f32.mrb[0].mxu0
  %v2944 = vadd.f32 0.0, %v2943
  %v2945 = vpop.f32.mrb[0].mxu0
  %2946 = vmatprep.mubr.f32.mxu0 0.0
  %2947 = vmatmul.mubr.f32.gmra.mrb[0].mxu0 %v2673
  %v2948 = vpop.f32.mrb[0].mxu0
  %v2949 = vadd.f32 0.0, %v2948
  %v2950 = vpop.f32.mrb[0].mxu0
  %2951 = vmatprep.mubr.f32.mxu0 0.0
  %2952 = vmatmul.mubr.f32.gmra.mrb[0].mxu0 %v2676
  %v2953 = vpop.f32.mrb[0].mxu0
  %v2954 = vadd.f32 0.0, %v2953
  %v2955 = vpop.f32.mrb[0].mxu0
  %2956 = vmatprep.mubr.f32.mxu0 0.0
  %2957 = vmatmul.mubr.f32.gmra.mrb[0].mxu0 %v2679
  %v2958 = vpop.f32.mrb[0].mxu0
  %v2959 = vadd.f32 0.0, %v2958
  %v2960 = vpop.f32.mrb[0].mxu0
  %2961 = vmatprep.mubr.f32.mxu0 0.0
  %2962 = vmatmul.mubr.f32.gmra.mrb[0].mxu0 %v2682
  %v2963 = vpop.f32.mrb[0].mxu0
  %v2964 = vadd.f32 0.0, %v2963
  %v2965 = vpop.f32.mrb[0].mxu0
  %2966 = vmatprep.mubr.f32.mxu0 0.0
  %2967 = vmatmul.mubr.f32.gmra.mrb[0].mxu0 %v2685
  %v2968 = vpop.f32.mrb[0].mxu0
  %v2969 = vadd.f32 0.0, %v2968
  %v2970 = vpop.f32.mrb[0].mxu0
  %2971 = vmatprep.mubr.f32.mxu0 0.0
  %2972 = vmatmul.mubr.f32.gmra.mrb[0].mxu0 %v2688
  %v2973 = vpop.f32.mrb[0].mxu0
  %v2974 = vadd.f32 0.0, %v2973
  %v2975 = vpop.f32.mrb[0].mxu0
  %2976 = vmatprep.mubr.f32.mxu0 0.0
  %2977 = vmatmul.mubr.f32.gmra.mrb[0].mxu0 %v2691
  %v2978 = vpop.f32.mrb[0].mxu0
  %v2979 = vadd.f32 0.0, %v2978
  %v2980 = vpop.f32.mrb[0].mxu0
  %2981 = vmatprep.mubr.f32.mxu0 0.0
  %2982 = vmatmul.mubr.f32.gmra.mrb[0].mxu0 %v2694
  %v2983 = vpop.f32.mrb[0].mxu0
  %v2984 = vadd.f32 0.0, %v2983
  %v2985 = vpop.f32.mrb[0].mxu0
  %2986 = vmatprep.mubr.f32.mxu0 0.0
  %2987 = vmatmul.mubr.f32.gmra.mrb[0].mxu0 %v2697
  %v2988 = vpop.f32.mrb[0].mxu0
  %v2989 = vadd.f32 0.0, %v2988
  %v2990 = vpop.f32.mrb[0].mxu0
  %2991 = vmatprep.mubr.f32.mxu0 0.0
  %2992 = vmatmul.mubr.f32.gmra.mrb[0].mxu0 %v2700
  %v2993 = vpop.f32.mrb[0].mxu0
  %v2994 = vadd.f32 0.0, %v2993
  %v2995 = vpop.f32.mrb[0].mxu0
  %2996 = vmatprep.mubr.f32.mxu0 0.0
  %2997 = vmatmul.mubr.f32.gmra.mrb[0].mxu0 %v2703
  %v2998 = vpop.f32.mrb[0].mxu0
  %v2999 = vadd.f32 0.0, %v2998
  %v3000 = vpop.f32.mrb[0].mxu0
  %3001 = vmatprep.mubr.f32.mxu0 0.0
  %3002 = vmatmul.mubr.f32.gmra.mrb[0].mxu0 %v2706
  %v3003 = vpop.f32.mrb[0].mxu0
  %v3004 = vadd.f32 0.0, %v3003
  %v3005 = vpop.f32.mrb[0].mxu0
  %3006 = vmatprep.mubr.f32.mxu0 0.0
  %3007 = vmatmul.mubr.f32.gmra.mrb[0].mxu0 %v2709
  %v3008 = vpop.f32.mrb[0].mxu0
  %v3009 = vadd.f32 0.0, %v3008
  %v3010 = vpop.f32.mrb[0].mxu0
  %3011 = vmatprep.mubr.f32.mxu0 0.0
  %3012 = vmatmul.mubr.f32.gmra.mrb[0].mxu0 %v2712
  %v3013 = vpop.f32.mrb[0].mxu0
  %v3014 = vadd.f32 0.0, %v3013
  %v3015 = vpop.f32.mrb[0].mxu0
  %3016 = vmatprep.mubr.f32.mxu0 0.0
  %3017 = vmatmul.mubr.f32.gmra.mrb[0].mxu0 %v2715
  %v3018 = vpop.f32.mrb[0].mxu0
  %v3019 = vadd.f32 0.0, %v3018
  %v3020 = vpop.f32.mrb[0].mxu0
  %3021 = vmatprep.mubr.f32.mxu0 0.0
  %3022 = vmatmul.mubr.f32.gmra.mrb[0].mxu0 %v2718
  %v3023 = vpop.f32.mrb[0].mxu0
  %v3024 = vadd.f32 0.0, %v3023
  %v3025 = vpop.f32.mrb[0].mxu0
  %3026 = vmatprep.mubr.f32.mxu0 0.0
  %3027 = vmatmul.mubr.f32.gmra.mrb[0].mxu0 %v2721
  %v3028 = vpop.f32.mrb[0].mxu0
  %v3029 = vadd.f32 0.0, %v3028
  %v3030 = vpop.f32.mrb[0].mxu0
  %3031 = vmatprep.mubr.f32.mxu0 0.0
  %3032 = vmatmul.mubr.f32.gmra.mrb[0].mxu0 %v2724
  %v3033 = vpop.f32.mrb[0].mxu0
  %v3034 = vadd.f32 0.0, %v3033
  %v3035 = vpop.f32.mrb[0].mxu0
  %3036 = vmatprep.mubr.f32.mxu0 0.0
  %3037 = vmatmul.mubr.f32.gmra.mrb[0].mxu0 %v2727
  %v3038 = vpop.f32.mrb[0].mxu0
  %v3039 = vadd.f32 0.0, %v3038
  %v3040 = vpop.f32.mrb[0].mxu0
  %3041 = vmatprep.mubr.f32.mxu0 0.0
  %3042 = vmatmul.mubr.f32.gmra.mrb[0].mxu0 %v2730
  %v3043 = vpop.f32.mrb[0].mxu0
  %v3044 = vadd.f32 0.0, %v3043
  %v3045 = vpop.f32.mrb[0].mxu0
  %3046 = vmatprep.mubr.f32.mxu0 0.0
  %3047 = vmatmul.mubr.f32.gmra.mrb[0].mxu0 %v2733
  %v3048 = vpop.f32.mrb[0].mxu0
  %v3049 = vadd.f32 0.0, %v3048
  %v3050 = vpop.f32.mrb[0].mxu0
  %3051 = vmatprep.mubr.f32.mxu0 0.0
  %3052 = vmatmul.mubr.f32.gmra.mrb[0].mxu0 %v2736
  %v3053 = vpop.f32.mrb[0].mxu0
  %v3054 = vadd.f32 0.0, %v3053
  %v3055 = vpop.f32.mrb[0].mxu0
  %3056 = vmatprep.mubr.f32.mxu0 0.0
  %3057 = vmatmul.mubr.f32.gmra.mrb[0].mxu0 %v2739
  %v3058 = vpop.f32.mrb[0].mxu0
  %v3059 = vadd.f32 0.0, %v3058
  %v3060 = vpop.f32.mrb[0].mxu0
  %3061 = vmatprep.mubr.f32.mxu0 0.0
  %3062 = vmatmul.mubr.f32.gmra.mrb[0].mxu0 %v2742
  %v3063 = vpop.f32.mrb[0].mxu0
  %v3064 = vadd.f32 0.0, %v3063
  %v3065 = vpop.f32.mrb[0].mxu0
  %3066 = vmatprep.mubr.f32.mxu0 0.0
  %3067 = vmatmul.mubr.f32.gmra.mrb[0].mxu0 %v2745
  %v3068 = vpop.f32.mrb[0].mxu0
  %v3069 = vadd.f32 0.0, %v3068
  %v3070 = vpop.f32.mrb[0].mxu0
  %3071 = vmatprep.mubr.f32.mxu0 0.0
  %3072 = vmatmul.mubr.f32.gmra.mrb[0].mxu0 %v2748
  %v3073 = vpop.f32.mrb[0].mxu0
  %v3074 = vadd.f32 0.0, %v3073
  %v3075 = vpop.f32.mrb[0].mxu0
  %3076 = vmatprep.mubr.f32.mxu0 0.0
  %3077 = vmatmul.mubr.f32.gmra.mrb[0].mxu0 %v2751
  %v3078 = vpop.f32.mrb[0].mxu0
  %v3079 = vadd.f32 0.0, %v3078
  %v3080 = vpop.f32.mrb[0].mxu0
  %3081 = vmatprep.mubr.f32.mxu0 0.0
  %3082 = vmatmul.mubr.f32.gmra.mrb[0].mxu0 %v2754
  %v3083 = vpop.f32.mrb[0].mxu0
  %v3084 = vadd.f32 0.0, %v3083
  %v3085 = vpop.f32.mrb[0].mxu0
  %3086 = vmatprep.mubr.f32.mxu0 0.0
  %3087 = vmatmul.mubr.f32.gmra.mrb[0].mxu0 %v2757
  %v3088 = vpop.f32.mrb[0].mxu0
  %v3089 = vadd.f32 0.0, %v3088
  %v3090 = vpop.f32.mrb[0].mxu0
  %3091 = vmatprep.mubr.f32.mxu0 0.0
  %3092 = vmatmul.mubr.f32.gmra.mrb[0].mxu0 %v2760
  %v3093 = vpop.f32.mrb[0].mxu0
  %v3094 = vadd.f32 0.0, %v3093
  %v3095 = vpop.f32.mrb[0].mxu0
  %3096 = vmatprep.mubr.f32.mxu0 0.0
  %3097 = vmatmul.mubr.f32.gmra.mrb[0].mxu0 %v2763
  %v3098 = vpop.f32.mrb[0].mxu0
  %v3099 = vadd.f32 0.0, %v3098
  %v3100 = vpop.f32.mrb[0].mxu0
  %3101 = vmatprep.mubr.f32.mxu0 0.0
  %3102 = vmatmul.mubr.f32.gmra.mrb[0].mxu0 %v2766
  %v3103 = vpop.f32.mrb[0].mxu0
  %v3104 = vadd.f32 0.0, %v3103
  %v3105 = vpop.f32.mrb[0].mxu0
  %3106 = vmatprep.mubr.f32.mxu0 0.0
  %3107 = vmatmul.mubr.f32.gmra.mrb[0].mxu0 %v2769
  %v3108 = vpop.f32.mrb[0].mxu0
  %v3109 = vadd.f32 0.0, %v3108
  %v3110 = vpop.f32.mrb[0].mxu0
  %3111 = vmatprep.mubr.f32.mxu0 0.0
  %3112 = vmatmul.mubr.f32.gmra.mrb[0].mxu0 %v2772
  %v3113 = vpop.f32.mrb[0].mxu0
  %v3114 = vadd.f32 0.0, %v3113
  %v3115 = vpop.f32.mrb[0].mxu0
  %3116 = vmatprep.mubr.f32.mxu0 0.0
  %3117 = vmatmul.mubr.f32.gmra.mrb[0].mxu0 %v2775
  %v3118 = vpop.f32.mrb[0].mxu0
  %v3119 = vadd.f32 0.0, %v3118
  %v3120 = vpop.f32.mrb[0].mxu0
  %3121 = vmatprep.mubr.f32.mxu0 0.0
  %3122 = vmatmul.mubr.f32.gmra.mrb[0].mxu0 %v2778
  %v3123 = vpop.f32.mrb[0].mxu0
  %v3124 = vadd.f32 0.0, %v3123
  %v3125 = vpop.f32.mrb[0].mxu0
  %3126 = vmatprep.mubr.f32.mxu0 0.0
  %3127 = vmatmul.mubr.f32.gmra.mrb[0].mxu0 %v2781
  %v3128 = vpop.f32.mrb[0].mxu0
  %v3129 = vadd.f32 0.0, %v3128
  %v3130 = vpop.f32.mrb[0].mxu0
  %3131 = vmatprep.mubr.f32.mxu0 0.0
  %3132 = vmatmul.mubr.f32.gmra.mrb[0].mxu0 %v2784
  %v3133 = vpop.f32.mrb[0].mxu0
  %v3134 = vadd.f32 0.0, %v3133
  %v3135 = vpop.f32.mrb[0].mxu0
  %3136 = vmatprep.mubr.f32.mxu0 0.0
  %3137 = vmatmul.mubr.f32.gmra.mrb[0].mxu0 %v2787
  %v3138 = vpop.f32.mrb[0].mxu0
  %v3139 = vadd.f32 0.0, %v3138
  %v3140 = vpop.f32.mrb[0].mxu0
  %3141 = vmatprep.mubr.f32.mxu0 0.0
  %3142 = vmatmul.mubr.f32.gmra.mrb[0].mxu0 %v2790
  %v3143 = vpop.f32.mrb[0].mxu0
  %v3144 = vadd.f32 0.0, %v3143
  %v3145 = vpop.f32.mrb[0].mxu0
  %3146 = vmatprep.mubr.f32.mxu0 0.0
  %3147 = vmatmul.mubr.f32.gmra.mrb[0].mxu0 %v2793
  %v3148 = vpop.f32.mrb[0].mxu0
  %v3149 = vadd.f32 0.0, %v3148
  %v3150 = vpop.f32.mrb[0].mxu0
  %3151 = vmatprep.mubr.f32.mxu0 0.0
  %3152 = vmatmul.mubr.f32.gmra.mrb[0].mxu0 %v2796
  %v3153 = vpop.f32.mrb[0].mxu0
  %v3154 = vadd.f32 0.0, %v3153
  %v3155 = vpop.f32.mrb[0].mxu0
  %3156 = vmatprep.mubr.f32.mxu0 0.0
  %3157 = vmatmul.mubr.f32.gmra.mrb[0].mxu0 %v2799
  %v3158 = vpop.f32.mrb[0].mxu0
  %v3159 = vadd.f32 0.0, %v3158
  %v3160 = vpop.f32.mrb[0].mxu0
  %3161 = vmatprep.mubr.f32.mxu0 0.0
  %3162 = vmatmul.mubr.f32.gmra.mrb[0].mxu0 %v2802
  %v3163 = vpop.f32.mrb[0].mxu0
  %v3164 = vadd.f32 0.0, %v3163
  %v3165 = vpop.f32.mrb[0].mxu0
  %3166 = vmatprep.mubr.f32.mxu0 0.0
  %3167 = vmatmul.mubr.f32.gmra.mrb[0].mxu0 %v2805
  %v3168 = vpop.f32.mrb[0].mxu0
  %v3169 = vadd.f32 0.0, %v3168
  %v3170 = vpop.f32.mrb[0].mxu0
  %3171 = vmatprep.mubr.f32.mxu0 0.0
  %3172 = vmatmul.mubr.f32.gmra.mrb[0].mxu0 %v2808
  %v3173 = vpop.f32.mrb[0].mxu0
  %v3174 = vadd.f32 0.0, %v3173
  %v3175 = vpop.f32.mrb[0].mxu0
  %3176 = vmatprep.mubr.f32.mxu0 0.0
  %3177 = vmatmul.mubr.f32.gmra.mrb[0].mxu0 %v2811
  %v3178 = vpop.f32.mrb[0].mxu0
  %v3179 = vadd.f32 0.0, %v3178
  %v3180 = vpop.f32.mrb[0].mxu0
  %3181 = vmatprep.mubr.f32.mxu0 0.0
  %3182 = vmatmul.mubr.f32.gmra.mrb[0].mxu0 %v2814
  %v3183 = vpop.f32.mrb[0].mxu0
  %v3184 = vadd.f32 0.0, %v3183
  %v3185 = vpop.f32.mrb[0].mxu0
  %3186 = vmatprep.mubr.f32.mxu0 0.0
  %3187 = vmatmul.mubr.f32.gmra.mrb[0].mxu0 %v2817
  %v3188 = vpop.f32.mrb[0].mxu0
  %v3189 = vadd.f32 0.0, %v3188
  %v3190 = vpop.f32.mrb[0].mxu0
  %3191 = vmatprep.mubr.f32.mxu0 0.0
  %3192 = vmatmul.mubr.f32.gmra.mrb[0].mxu0 %v2820
  %v3193 = vpop.f32.mrb[0].mxu0
  %v3194 = vadd.f32 0.0, %v3193
  %v3195 = vpop.f32.mrb[0].mxu0
  %3196 = vmatprep.mubr.f32.mxu0 0.0
  %3197 = vmatmul.mubr.f32.gmra.mrb[0].mxu0 %v2823
  %v3198 = vpop.f32.mrb[0].mxu0
  %v3199 = vadd.f32 0.0, %v3198
  %v3200 = vpop.f32.mrb[0].mxu0
  %3201 = vmatprep.mubr.f32.mxu0 0.0
  %3202 = vmatmul.mubr.f32.gmra.mrb[0].mxu0 %v2826
  %v3203 = vpop.f32.mrb[0].mxu0
  %v3204 = vadd.f32 0.0, %v3203
  %v3205 = vpop.f32.mrb[0].mxu0
  %3206 = vmatprep.mubr.f32.mxu0 0.0
  %3207 = vmatmul.mubr.f32.gmra.mrb[0].mxu0 %v2829
  %v3208 = vpop.f32.mrb[0].mxu0
  %v3209 = vadd.f32 0.0, %v3208
  %v3210 = vpop.f32.mrb[0].mxu0
  %3211 = vmatprep.mubr.f32.mxu0 0.0
  %3212 = vmatmul.mubr.f32.gmra.mrb[0].mxu0 %v2832
  %v3213 = vpop.f32.mrb[0].mxu0
  %v3214 = vadd.f32 0.0, %v3213
  %v3215 = vpop.f32.mrb[0].mxu0
  %3216 = vmatprep.mubr.f32.mxu0 0.0
  %3217 = vmatmul.mubr.f32.gmra.mrb[0].mxu0 %v2835
  %v3218 = vpop.f32.mrb[0].mxu0
  %v3219 = vadd.f32 0.0, %v3218
  %v3220 = vpop.f32.mrb[0].mxu0
  %3221 = vmatprep.mubr.f32.mxu0 0.0
  %3222 = vmatmul.mubr.f32.gmra.mrb[0].mxu0 %v2838
  %v3223 = vpop.f32.mrb[0].mxu0
  %v3224 = vadd.f32 0.0, %v3223
  %v3225 = vpop.f32.mrb[0].mxu0
  %3226 = vmatprep.mubr.f32.mxu0 0.0
  %3227 = vmatmul.mubr.f32.gmra.mrb[0].mxu0 %v2841
  %v3228 = vpop.f32.mrb[0].mxu0
  %v3229 = vadd.f32 0.0, %v3228
  %v3230 = vpop.f32.mrb[0].mxu0
  %3231 = vdwg.mxu0
  %3232 = vst.msk [vmem:[%s2] sm:$0xff] %vm2190, %v2914
  %3233 = vst.msk [vmem:[%s2 + $0x8] sm:$0xff] %vm2190, %v2919
  %3234 = vst.msk [vmem:[%s2 + $0x10] sm:$0xff] %vm2190, %v2924
  %3235 = vst.msk [vmem:[%s2 + $0x18] sm:$0xff] %vm2190, %v2929
  %3236 = vst.msk [vmem:[%s2 + $0x20] sm:$0xff] %vm2190, %v2934
  %3237 = vst.msk [vmem:[%s2 + $0x28] sm:$0xff] %vm2190, %v2939
  %3238 = vst.msk [vmem:[%s2 + $0x30] sm:$0xff] %vm2190, %v2944
  %3239 = vst.msk [vmem:[%s2 + $0x38] sm:$0xff] %vm2190, %v2949
  %3240 = vst.msk [vmem:[%s2 + $0x40] sm:$0xff] %vm2190, %v2954
  %3241 = vst.msk [vmem:[%s2 + $0x48] sm:$0xff] %vm2190, %v2959
  %3242 = vst.msk [vmem:[%s2 + $0x50] sm:$0xff] %vm2190, %v2964
  %3243 = vst.msk [vmem:[%s2 + $0x58] sm:$0xff] %vm2190, %v2969
  %3244 = vst.msk [vmem:[%s2 + $0x60] sm:$0xff] %vm2190, %v2974
  %3245 = vst.msk [vmem:[%s2 + $0x68] sm:$0xff] %vm2190, %v2979
  %3246 = vst.msk [vmem:[%s2 + $0x70] sm:$0xff] %vm2190, %v2984
  %3247 = vst.msk [vmem:[%s2 + $0x78] sm:$0xff] %vm2190, %v2989
  %3248 = vst.msk [vmem:[%s2 + $0x80] sm:$0xff] %vm2190, %v2994
  %3249 = vst.msk [vmem:[%s2 + $0x88] sm:$0xff] %vm2190, %v2999
  %3250 = vst.msk [vmem:[%s2 + $0x90] sm:$0xff] %vm2190, %v3004
  %3251 = vst.msk [vmem:[%s2 + $0x98] sm:$0xff] %vm2190, %v3009
  %3252 = vst.msk [vmem:[%s2 + $0xa0] sm:$0xff] %vm2190, %v3014
  %3253 = vst.msk [vmem:[%s2 + $0xa8] sm:$0xff] %vm2190, %v3019
  %3254 = vst.msk [vmem:[%s2 + $0xb0] sm:$0xff] %vm2190, %v3024
  %3255 = vst.msk [vmem:[%s2 + $0xb8] sm:$0xff] %vm2190, %v3029
  %3256 = vst.msk [vmem:[%s2 + $0xc0] sm:$0xff] %vm2190, %v3034
  %3257 = vst.msk [vmem:[%s2 + $0xc8] sm:$0xff] %vm2190, %v3039
  %3258 = vst.msk [vmem:[%s2 + $0xd0] sm:$0xff] %vm2190, %v3044
  %3259 = vst.msk [vmem:[%s2 + $0xd8] sm:$0xff] %vm2190, %v3049
  %3260 = vst.msk [vmem:[%s2 + $0xe0] sm:$0xff] %vm2190, %v3054
  %3261 = vst.msk [vmem:[%s2 + $0xe8] sm:$0xff] %vm2190, %v3059
  %3262 = vst.msk [vmem:[%s2 + $0xf0] sm:$0xff] %vm2190, %v3064
  %3263 = vst.msk [vmem:[%s2 + $0xf8] sm:$0xff] %vm2190, %v3069
  %3264 = vst.msk [vmem:[%s2 + $0x100] sm:$0xff] %vm2190, %v3074
  %3265 = vst.msk [vmem:[%s2 + $0x108] sm:$0xff] %vm2190, %v3079
  %3266 = vst.msk [vmem:[%s2 + $0x110] sm:$0xff] %vm2190, %v3084
  %3267 = vst.msk [vmem:[%s2 + $0x118] sm:$0xff] %vm2190, %v3089
  %3268 = vst.msk [vmem:[%s2 + $0x120] sm:$0xff] %vm2190, %v3094
  %3269 = vst.msk [vmem:[%s2 + $0x128] sm:$0xff] %vm2190, %v3099
  %3270 = vst.msk [vmem:[%s2 + $0x130] sm:$0xff] %vm2190, %v3104
  %3271 = vst.msk [vmem:[%s2 + $0x138] sm:$0xff] %vm2190, %v3109
  %3272 = vst.msk [vmem:[%s2 + $0x140] sm:$0xff] %vm2190, %v3114
  %3273 = vst.msk [vmem:[%s2 + $0x148] sm:$0xff] %vm2190, %v3119
  %3274 = vst.msk [vmem:[%s2 + $0x150] sm:$0xff] %vm2190, %v3124
  %3275 = vst.msk [vmem:[%s2 + $0x158] sm:$0xff] %vm2190, %v3129
  %3276 = vst.msk [vmem:[%s2 + $0x160] sm:$0xff] %vm2190, %v3134
  %3277 = vst.msk [vmem:[%s2 + $0x168] sm:$0xff] %vm2190, %v3139
  %3278 = vst.msk [vmem:[%s2 + $0x170] sm:$0xff] %vm2190, %v3144
  %3279 = vst.msk [vmem:[%s2 + $0x178] sm:$0xff] %vm2190, %v3149
  %3280 = vst.msk [vmem:[%s2 + $0x180] sm:$0xff] %vm2190, %v3154
  %3281 = vst.msk [vmem:[%s2 + $0x188] sm:$0xff] %vm2190, %v3159
  %3282 = vst.msk [vmem:[%s2 + $0x190] sm:$0xff] %vm2190, %v3164
  %3283 = vst.msk [vmem:[%s2 + $0x198] sm:$0xff] %vm2190, %v3169
  %3284 = vst.msk [vmem:[%s2 + $0x1a0] sm:$0xff] %vm2190, %v3174
  %3285 = vst.msk [vmem:[%s2 + $0x1a8] sm:$0xff] %vm2190, %v3179
  %3286 = vst.msk [vmem:[%s2 + $0x1b0] sm:$0xff] %vm2190, %v3184
  %3287 = vst.msk [vmem:[%s2 + $0x1b8] sm:$0xff] %vm2190, %v3189
  %3288 = vst.msk [vmem:[%s2 + $0x1c0] sm:$0xff] %vm2190, %v3194
  %3289 = vst.msk [vmem:[%s2 + $0x1c8] sm:$0xff] %vm2190, %v3199
  %3290 = vst.msk [vmem:[%s2 + $0x1d0] sm:$0xff] %vm2190, %v3204
  %3291 = vst.msk [vmem:[%s2 + $0x1d8] sm:$0xff] %vm2190, %v3209
  %3292 = vst.msk [vmem:[%s2 + $0x1e0] sm:$0xff] %vm2190, %v3214
  %3293 = vst.msk [vmem:[%s2 + $0x1e8] sm:$0xff] %vm2190, %v3219
  %3294 = vst.msk [vmem:[%s2 + $0x1f0] sm:$0xff] %vm2190, %v3224
  %3295 = vst.msk [vmem:[%s2 + $0x1f8] sm:$0xff] %vm2190, %v3229
  // Predicated region
  $region10: #{tpu_custom_call.1} parent=0 // pred_check
    _
  $region11: #{tpu_custom_call.1} parent=0 // pred_check_branch
    %3297 = sbr.rel (0) target = $region13
  $region12: #{tpu_custom_call.1} parent=0 // pred_region
    _
  $region13: #{tpu_custom_call.1} parent=0 // pred_fallthru
    _
  // Predicated region
  $region14: #{tpu_custom_call.1} parent=0 // pred_check
    _
  $region15: #{tpu_custom_call.1} parent=0 // pred_check_branch
    %3299 = sbr.rel (0) target = $region17
  $region16: #{tpu_custom_call.1} parent=0 // pred_region
    _
  $region17: #{tpu_custom_call.1} parent=0 // pred_fallthru
    _

</llo_original>
